<compile_context>
chip_gen: v6e
topology: v6e:2x2x1
jax: 0.10.0
libtpu: 0.0.40
codegen_flags: <defaults>
</compile_context>

<pallas_src>
import functools

import jax
import jax.numpy as jnp
from jax.experimental import pallas as pl
from jax.experimental.pallas import tpu as pltpu

PART = 7
EPS = 1e-6


# ---------------------------------------------------------------------------
# Kernels
# ---------------------------------------------------------------------------
def _layernorm(x, w, b):
    # PyTorch nn.LayerNorm semantics: normalize over the last dim, biased var.
    mu = jnp.mean(x, axis=-1, keepdims=True)
    xc = x - mu
    var = jnp.mean(xc * xc, axis=-1, keepdims=True)
    return xc * jax.lax.rsqrt(var + EPS) * w + b


def _attn_kernel(box_ref, ln_ref, rlwt_ref, out_ref, *, g, d, scl, bblk):
    """Grouped attention + rect (Linear + LayerNorm) for a block of batches.

    box_ref : (BBLK, N, c)  pooled tokens
    ln_ref  : (8, c)        packed LN params: qw,qb,kw,kb,vw,vb,rect_ln_w,rect_ln_b
    rlwt_ref: (c, c)        rect Linear weight, already transposed (W^T)
    out_ref : (BBLK, N, c)  additive 'shift'
    """
    box = box_ref[...].astype(jnp.float32)             # (BBLK, N, c)
    ln = ln_ref[...]                                    # (8, c)

    q = _layernorm(box, ln[0:1], ln[1:2])
    k = _layernorm(box, ln[2:3], ln[3:4])
    v = _layernorm(box, ln[4:5], ln[5:6])

    group_outs = []
    for gi in range(g):                                 # g is small & static
        sl = slice(gi * d, (gi + 1) * d)
        qg, kg, vg = q[..., sl], k[..., sl], v[..., sl]           # (BBLK, N, d)
        # contraction over last dims (no in-kernel transpose of k)
        sim = scl * jnp.einsum("bnd,bmd->bnm", qg, kg,
                               preferred_element_type=jnp.float32)
        sim = sim - jnp.max(sim, axis=-1, keepdims=True)
        p = jnp.exp(sim)
        p = p * pl.reciprocal(jnp.sum(p, axis=-1, keepdims=True), approx=True)
        group_outs.append(jnp.einsum("bnm,bmd->bnd", p, vg,
                                     preferred_element_type=jnp.float32))
    pre = jnp.concatenate(group_outs, axis=-1)          # (BBLK, N, c)

    rlwt = rlwt_ref[...]                                # (c, c) == W^T
    for bi in range(bblk):                              # small static loop, 2-D MXU dots
        y = jnp.dot(pre[bi], rlwt, preferred_element_type=jnp.float32)   # (N, c)
        y = _layernorm(y, ln[6:7], ln[7:8])
        out_ref[bi] = y.astype(out_ref.dtype)


def _gating_kernel(x_ref, s_ref, e_ref, o_ref):
    """out = x * sigmoid(expand(shift) + x).

    x_ref : (TILE_M, K)   K = h*w
    s_ref : (TILE_M, N)   N = 49 compact shift values per (b, c) row
    e_ref : (N, K)        constant 0/1 expansion matrix (resident in VMEM)
    """
    x = x_ref[...].astype(jnp.float32)
    s = jnp.dot(s_ref[...], e_ref[...], preferred_element_type=jnp.float32)
    o_ref[...] = (x * jax.nn.sigmoid(s + x)).astype(o_ref.dtype)


# ---------------------------------------------------------------------------
# Tiling helpers
# ---------------------------------------------------------------------------
def _pick_batch_block(b):
    if b < 4:
        return 1
    for cand in (8, 4, 2):
        if b % cand == 0 and b // cand >= 2:
            return cand
    return 1


def _pick_tile_m(M, K, itemsize=4, vmem_budget=10 << 20, target=1024):
    # x-in + out (input dtype) + compact shift (f32), all double-buffered.
    # Stay well under the smallest scoped-VMEM default (v5e 16 MiB) even
    # before we raise vmem_limit_bytes, and leave room for the expansion mat.
    per_row = 2 * (2 * K * itemsize + PART * PART * 4)
    cap = max(8, min(target, vmem_budget // max(per_row, 1)))
    cap = min(cap, M)
    if M >= 16:
        cap = min(cap, M // 2)   # >= 2 grid steps: pipelining + megacore
    for t in range(int(cap), 7, -1):
        if M % t == 0 and t % 8 == 0:
            return t
    return M


# ---------------------------------------------------------------------------
# Wrapper
# ---------------------------------------------------------------------------
def init_silutopsis_params(dim, key):
    """Deterministic parameter init mirroring the module's __init__/reset."""
    ones = jnp.ones((dim,), jnp.float32)
    zeros = jnp.zeros((dim,), jnp.float32)
    # rect Linear weight: trunc_normal_(std=0.02); LayerNorms: weight=1, bias=0.
    rlw = 0.02 * jax.random.truncated_normal(key, -2.0, 2.0, (dim, dim), jnp.float32)
    return dict(q_w=ones, q_b=zeros, k_w=ones, k_b=zeros, v_w=ones, v_b=zeros,
                rect_lin_w=rlw, rect_ln_w=ones, rect_ln_b=zeros)


def silutopsis_forward(x, params):
    b, c, h, w = x.shape
    part = PART
    T = h // part
    assert h == part * T and w == part * T, "spatial must be 7*T"
    N = part * part
    g = max(c // 32, 1)
    d = c // g
    scl = float(d) ** (-0.5)

    # --- partition (AvgPool2d(T, T)) + flatten(2).transpose(1,2)  -> (b, N, c) ---
    if T > 1:
        box = x.reshape(b, c, part, T, part, T).mean(axis=(3, 5))
    else:
        box = x.reshape(b, c, part, part)
    box = box.reshape(b, c, N).transpose(0, 2, 1).astype(jnp.float32)   # (b, N, c)

    # packed LN params (one aligned (8, c) DMA) and pre-transposed rect weight
    ln_packed = jnp.stack(
        [params["q_w"], params["q_b"], params["k_w"], params["k_b"],
         params["v_w"], params["v_b"], params["rect_ln_w"], params["rect_ln_b"]],
        axis=0).astype(jnp.float32)                                     # (8, c)
    rlw_t = params["rect_lin_w"].T.astype(jnp.float32)                  # (c, c)

    # --- grouped attention + rect, blocks of batch elements per grid step ---
    bblk = _pick_batch_block(b)
    shift = pl.pallas_call(
        functools.partial(_attn_kernel, g=g, d=d, scl=scl, bblk=bblk),
        out_shape=jax.ShapeDtypeStruct((b, N, c), jnp.float32),
        grid=(b // bblk,),
        in_specs=[
            pl.BlockSpec((bblk, N, c), lambda i: (i, 0, 0)),   # box
            pl.BlockSpec((8, c), lambda i: (0, 0)),            # packed LN params
            pl.BlockSpec((c, c), lambda i: (0, 0)),            # rect Linear W^T
        ],
        out_specs=pl.BlockSpec((bblk, N, c), lambda i: (i, 0, 0)),
        compiler_params=pltpu.CompilerParams(
            dimension_semantics=("parallel",),
            vmem_limit_bytes=32 << 20),
    )(box, ln_packed, rlw_t)

    # --- gating: keep shift compact in HBM, expand it on-chip ---
    M, K = b * c, h * w
    x2 = x.reshape(M, K)                                 # keep input dtype (no copy)
    s2 = shift.transpose(0, 2, 1).reshape(M, N)          # (b*c, 49), small

    part_idx = jnp.repeat(jnp.arange(part, dtype=jnp.int32), T)          # (h,)
    n_map = (part_idx[:, None] * part + part_idx[None, :]).reshape(-1)   # (K,)
    expand = (jnp.arange(N, dtype=jnp.int32)[:, None] == n_map[None, :]
              ).astype(jnp.float32)                                      # (N, K)

    tile_m = _pick_tile_m(M, K, jnp.dtype(x.dtype).itemsize)
    out = pl.pallas_call(
        _gating_kernel,
        out_shape=jax.ShapeDtypeStruct((M, K), x.dtype),
        grid=(M // tile_m,),
        in_specs=[
            pl.BlockSpec((tile_m, K), lambda i: (i, 0)),    # x rows
            pl.BlockSpec((tile_m, N), lambda i: (i, 0)),    # compact shift rows
            pl.BlockSpec((N, K), lambda i: (0, 0)),         # expansion matrix (resident)
        ],
        out_specs=pl.BlockSpec((tile_m, K), lambda i: (i, 0)),
        compiler_params=pltpu.CompilerParams(
            dimension_semantics=("parallel",),
            vmem_limit_bytes=32 << 20),
    )(x2, s2, expand)
    return out.reshape(b, c, h, w)


# ---------------------------------------------------------------------------
# Pure-JAX reference (sanity check against the kernels)
# ---------------------------------------------------------------------------
def silutopsis_reference(x, params):
    b, c, h, w = x.shape
    part = PART
    T = h // part
    N = part * part
    g = max(c // 32, 1)
    d = c // g
    scl = float(d) ** (-0.5)

    def ln(v, wt, bs):
        mu = jnp.mean(v, axis=-1, keepdims=True)
        var = jnp.mean((v - mu) ** 2, axis=-1, keepdims=True)
        return (v - mu) * jax.lax.rsqrt(var + EPS) * wt + bs

    box = x.reshape(b, c, part, T, part, T).mean(axis=(3, 5)) if T > 1 else x
    box = box.reshape(b, c, N).transpose(0, 2, 1)
    q = ln(box, params["q_w"], params["q_b"]).reshape(b, N, g, d).transpose(0, 2, 1, 3)
    k = ln(box, params["k_w"], params["k_b"]).reshape(b, N, g, d).transpose(0, 2, 1, 3)
    v = ln(box, params["v_w"], params["v_b"]).reshape(b, N, g, d).transpose(0, 2, 1, 3)
    sim = scl * jnp.einsum("bgnd,bgmd->bgnm", q, k, precision=jax.lax.Precision.HIGHEST)
    sim = jax.nn.softmax(sim, axis=-1)
    shift = jnp.einsum("bgnm,bgmd->bgnd", sim, v, precision=jax.lax.Precision.HIGHEST)
    shift = shift.transpose(0, 2, 1, 3).reshape(b, N, c)
    shift = jnp.dot(shift, params["rect_lin_w"].T, precision=jax.lax.Precision.HIGHEST)
    shift = ln(shift, params["rect_ln_w"], params["rect_ln_b"])
    shift = shift.transpose(0, 2, 1).reshape(b, c, part, 1, part, 1)
    xv = x.reshape(b, c, part, T, part, T)
    return (xv * jax.nn.sigmoid(shift + xv)).reshape(b, c, h, w)


if __name__ == "__main__":
    key = jax.random.PRNGKey(0)
    k_x, k_w = jax.random.split(key)

    # dim=64 -> g=2 groups of d=32; spatial=14 -> part=7, T=2 (AvgPool active).
    b, c, h, w = 2, 64, 14, 14
    x = jax.random.normal(k_x, (b, c, h, w), dtype=jnp.float32)
    params = init_silutopsis_params(c, k_w)

    fwd = jax.jit(silutopsis_forward)
    out = jax.block_until_ready(fwd(x, params))

    ref = silutopsis_reference(x, params)
    assert out.shape == (b, c, h, w)
    max_err = float(jnp.max(jnp.abs(out - ref)))
    assert jnp.allclose(out, ref, atol=2e-3, rtol=2e-3), max_err

    print("KERNEL_OK")
</pallas_src>

<mosaic_0001>
module attributes {stable_mosaic.version = 11 : i64} {
  func.func @_attn_kernel(%arg0: i32, %arg1: memref<1x49x64xf32, #tpu.memory_space<vmem>>, %arg2: memref<8x64xf32, #tpu.memory_space<vmem>>, %arg3: memref<64x64xf32, #tpu.memory_space<vmem>>, %arg4: memref<1x49x64xf32, #tpu.memory_space<vmem>>) attributes {dimension_semantics = [#tpu.dimension_semantics<parallel>], iteration_bounds = array<i64: 2>, scalar_prefetch = 0 : i64, scratch_operands = 0 : i64, tpu.core_type = #tpu.core_type<tc>, window_params = [{transform_indices = @transform_0, window_bounds = array<i64: 1, 49, 64>}, {pipeline_mode = #tpu.pipeline_mode<synchronous>, transform_indices = @transform_1, window_bounds = array<i64: 8, 64>}, {pipeline_mode = #tpu.pipeline_mode<synchronous>, transform_indices = @transform_2, window_bounds = array<i64: 64, 64>}, {transform_indices = @transform_3, window_bounds = array<i64: 1, 49, 64>}]} {
    %c0 = arith.constant 0 : index
    %c0_0 = arith.constant 0 : index
    %c0_1 = arith.constant 0 : index
    %0 = vector.load %arg1[%c0, %c0_0, %c0_1] : memref<1x49x64xf32, #tpu.memory_space<vmem>>, vector<1x49x64xf32>
    %c0_2 = arith.constant 0 : index
    %c0_3 = arith.constant 0 : index
    %1 = vector.load %arg2[%c0_2, %c0_3] : memref<8x64xf32, #tpu.memory_space<vmem>>, vector<8x64xf32>
    %2 = vector.extract_strided_slice %1 {offsets = [0, 0], sizes = [1, 64], strides = [1, 1]} : vector<8x64xf32> to vector<1x64xf32>
    %3 = vector.extract_strided_slice %1 {offsets = [1, 0], sizes = [1, 64], strides = [1, 1]} : vector<8x64xf32> to vector<1x64xf32>
    %cst = arith.constant dense<0.000000e+00> : vector<1x49xf32>
    %4 = vector.multi_reduction <add>, %0, %cst [2] : vector<1x49x64xf32> to vector<1x49xf32>
    %5 = vector.shape_cast %4 : vector<1x49xf32> to vector<1x49x1xf32>
    %cst_4 = arith.constant 6.400000e+01 : f32
    %6 = vector.broadcast %cst_4 : f32 to vector<1x49x1xf32>
    %7 = arith.divf %5, %6 : vector<1x49x1xf32>
    %8 = vector.broadcast %7 : vector<1x49x1xf32> to vector<1x49x64xf32>
    %9 = arith.subf %0, %8 : vector<1x49x64xf32>
    %10 = arith.mulf %9, %9 : vector<1x49x64xf32>
    %cst_5 = arith.constant dense<0.000000e+00> : vector<1x49xf32>
    %11 = vector.multi_reduction <add>, %10, %cst_5 [2] : vector<1x49x64xf32> to vector<1x49xf32>
    %12 = vector.shape_cast %11 : vector<1x49xf32> to vector<1x49x1xf32>
    %cst_6 = arith.constant 6.400000e+01 : f32
    %13 = vector.broadcast %cst_6 : f32 to vector<1x49x1xf32>
    %14 = arith.divf %12, %13 : vector<1x49x1xf32>
    %cst_7 = arith.constant 9.99999997E-7 : f32
    %15 = vector.broadcast %cst_7 : f32 to vector<1x49x1xf32>
    %16 = arith.addf %14, %15 : vector<1x49x1xf32>
    %17 = math.rsqrt %16 : vector<1x49x1xf32>
    %18 = vector.broadcast %17 : vector<1x49x1xf32> to vector<1x49x64xf32>
    %19 = arith.mulf %9, %18 : vector<1x49x64xf32>
    %20 = vector.shape_cast %2 : vector<1x64xf32> to vector<1x1x64xf32>
    %21 = vector.broadcast %20 : vector<1x1x64xf32> to vector<1x49x64xf32>
    %22 = arith.mulf %19, %21 : vector<1x49x64xf32>
    %23 = vector.shape_cast %3 : vector<1x64xf32> to vector<1x1x64xf32>
    %24 = vector.broadcast %23 : vector<1x1x64xf32> to vector<1x49x64xf32>
    %25 = arith.addf %22, %24 : vector<1x49x64xf32>
    %26 = vector.extract_strided_slice %1 {offsets = [2, 0], sizes = [1, 64], strides = [1, 1]} : vector<8x64xf32> to vector<1x64xf32>
    %27 = vector.extract_strided_slice %1 {offsets = [3, 0], sizes = [1, 64], strides = [1, 1]} : vector<8x64xf32> to vector<1x64xf32>
    %cst_8 = arith.constant dense<0.000000e+00> : vector<1x49xf32>
    %28 = vector.multi_reduction <add>, %0, %cst_8 [2] : vector<1x49x64xf32> to vector<1x49xf32>
    %29 = vector.shape_cast %28 : vector<1x49xf32> to vector<1x49x1xf32>
    %cst_9 = arith.constant 6.400000e+01 : f32
    %30 = vector.broadcast %cst_9 : f32 to vector<1x49x1xf32>
    %31 = arith.divf %29, %30 : vector<1x49x1xf32>
    %32 = vector.broadcast %31 : vector<1x49x1xf32> to vector<1x49x64xf32>
    %33 = arith.subf %0, %32 : vector<1x49x64xf32>
    %34 = arith.mulf %33, %33 : vector<1x49x64xf32>
    %cst_10 = arith.constant dense<0.000000e+00> : vector<1x49xf32>
    %35 = vector.multi_reduction <add>, %34, %cst_10 [2] : vector<1x49x64xf32> to vector<1x49xf32>
    %36 = vector.shape_cast %35 : vector<1x49xf32> to vector<1x49x1xf32>
    %cst_11 = arith.constant 6.400000e+01 : f32
    %37 = vector.broadcast %cst_11 : f32 to vector<1x49x1xf32>
    %38 = arith.divf %36, %37 : vector<1x49x1xf32>
    %cst_12 = arith.constant 9.99999997E-7 : f32
    %39 = vector.broadcast %cst_12 : f32 to vector<1x49x1xf32>
    %40 = arith.addf %38, %39 : vector<1x49x1xf32>
    %41 = math.rsqrt %40 : vector<1x49x1xf32>
    %42 = vector.broadcast %41 : vector<1x49x1xf32> to vector<1x49x64xf32>
    %43 = arith.mulf %33, %42 : vector<1x49x64xf32>
    %44 = vector.shape_cast %26 : vector<1x64xf32> to vector<1x1x64xf32>
    %45 = vector.broadcast %44 : vector<1x1x64xf32> to vector<1x49x64xf32>
    %46 = arith.mulf %43, %45 : vector<1x49x64xf32>
    %47 = vector.shape_cast %27 : vector<1x64xf32> to vector<1x1x64xf32>
    %48 = vector.broadcast %47 : vector<1x1x64xf32> to vector<1x49x64xf32>
    %49 = arith.addf %46, %48 : vector<1x49x64xf32>
    %50 = vector.extract_strided_slice %1 {offsets = [4, 0], sizes = [1, 64], strides = [1, 1]} : vector<8x64xf32> to vector<1x64xf32>
    %51 = vector.extract_strided_slice %1 {offsets = [5, 0], sizes = [1, 64], strides = [1, 1]} : vector<8x64xf32> to vector<1x64xf32>
    %cst_13 = arith.constant dense<0.000000e+00> : vector<1x49xf32>
    %52 = vector.multi_reduction <add>, %0, %cst_13 [2] : vector<1x49x64xf32> to vector<1x49xf32>
    %53 = vector.shape_cast %52 : vector<1x49xf32> to vector<1x49x1xf32>
    %cst_14 = arith.constant 6.400000e+01 : f32
    %54 = vector.broadcast %cst_14 : f32 to vector<1x49x1xf32>
    %55 = arith.divf %53, %54 : vector<1x49x1xf32>
    %56 = vector.broadcast %55 : vector<1x49x1xf32> to vector<1x49x64xf32>
    %57 = arith.subf %0, %56 : vector<1x49x64xf32>
    %58 = arith.mulf %57, %57 : vector<1x49x64xf32>
    %cst_15 = arith.constant dense<0.000000e+00> : vector<1x49xf32>
    %59 = vector.multi_reduction <add>, %58, %cst_15 [2] : vector<1x49x64xf32> to vector<1x49xf32>
    %60 = vector.shape_cast %59 : vector<1x49xf32> to vector<1x49x1xf32>
    %cst_16 = arith.constant 6.400000e+01 : f32
    %61 = vector.broadcast %cst_16 : f32 to vector<1x49x1xf32>
    %62 = arith.divf %60, %61 : vector<1x49x1xf32>
    %cst_17 = arith.constant 9.99999997E-7 : f32
    %63 = vector.broadcast %cst_17 : f32 to vector<1x49x1xf32>
    %64 = arith.addf %62, %63 : vector<1x49x1xf32>
    %65 = math.rsqrt %64 : vector<1x49x1xf32>
    %66 = vector.broadcast %65 : vector<1x49x1xf32> to vector<1x49x64xf32>
    %67 = arith.mulf %57, %66 : vector<1x49x64xf32>
    %68 = vector.shape_cast %50 : vector<1x64xf32> to vector<1x1x64xf32>
    %69 = vector.broadcast %68 : vector<1x1x64xf32> to vector<1x49x64xf32>
    %70 = arith.mulf %67, %69 : vector<1x49x64xf32>
    %71 = vector.shape_cast %51 : vector<1x64xf32> to vector<1x1x64xf32>
    %72 = vector.broadcast %71 : vector<1x1x64xf32> to vector<1x49x64xf32>
    %73 = arith.addf %70, %72 : vector<1x49x64xf32>
    %74 = vector.extract_strided_slice %25 {offsets = [0, 0, 0], sizes = [1, 49, 32], strides = [1, 1, 1]} : vector<1x49x64xf32> to vector<1x49x32xf32>
    %75 = vector.extract_strided_slice %49 {offsets = [0, 0, 0], sizes = [1, 49, 32], strides = [1, 1, 1]} : vector<1x49x64xf32> to vector<1x49x32xf32>
    %76 = vector.extract_strided_slice %73 {offsets = [0, 0, 0], sizes = [1, 49, 32], strides = [1, 1, 1]} : vector<1x49x64xf32> to vector<1x49x32xf32>
    "tpu.trace_start"() <{level = 10 : i32, message = "bnd,bmd->bnm"}> : () -> ()
    %cst_18 = arith.constant dense<0.000000e+00> : vector<1x49x49xf32>
    %77 = tpu.matmul %74, %75, %cst_18 {dimension_numbers = #tpu.dot_dimension_numbers<[2], [2], [1], [1], [0, 0, 0, 1, 1, 1], [0], [0]>} : vector<1x49x32xf32>, vector<1x49x32xf32>, vector<1x49x49xf32> -> vector<1x49x49xf32>
    "tpu.trace_stop"() : () -> ()
    %cst_19 = arith.constant 0.176776692 : f32
    %78 = vector.broadcast %cst_19 : f32 to vector<1x49x49xf32>
    %79 = arith.mulf %78, %77 : vector<1x49x49xf32>
    %cst_20 = arith.constant dense<0xFF800000> : vector<1x49xf32>
    %80 = vector.multi_reduction <maximumf>, %79, %cst_20 [2] : vector<1x49x49xf32> to vector<1x49xf32>
    %81 = vector.shape_cast %80 : vector<1x49xf32> to vector<1x49x1xf32>
    %82 = vector.broadcast %81 : vector<1x49x1xf32> to vector<1x49x49xf32>
    %83 = arith.subf %79, %82 : vector<1x49x49xf32>
    %84 = math.exp %83 : vector<1x49x49xf32>
    %cst_21 = arith.constant dense<0.000000e+00> : vector<1x49xf32>
    %85 = vector.multi_reduction <add>, %84, %cst_21 [2] : vector<1x49x49xf32> to vector<1x49xf32>
    %86 = vector.shape_cast %85 : vector<1x49xf32> to vector<1x49x1xf32>
    %87 = tpu.reciprocal %86 {approx = true} : vector<1x49x1xf32> -> vector<1x49x1xf32>
    %88 = vector.broadcast %87 : vector<1x49x1xf32> to vector<1x49x49xf32>
    %89 = arith.mulf %84, %88 : vector<1x49x49xf32>
    "tpu.trace_start"() <{level = 10 : i32, message = "bnm,bmd->bnd"}> : () -> ()
    %cst_22 = arith.constant dense<0.000000e+00> : vector<1x49x32xf32>
    %90 = tpu.matmul %89, %76, %cst_22 {dimension_numbers = #tpu.dot_dimension_numbers<[2], [1], [1], [2], [0, 0, 0, 1, 1, 2], [0], [0]>} : vector<1x49x49xf32>, vector<1x49x32xf32>, vector<1x49x32xf32> -> vector<1x49x32xf32>
    "tpu.trace_stop"() : () -> ()
    %91 = vector.extract_strided_slice %25 {offsets = [0, 0, 32], sizes = [1, 49, 32], strides = [1, 1, 1]} : vector<1x49x64xf32> to vector<1x49x32xf32>
    %92 = vector.extract_strided_slice %49 {offsets = [0, 0, 32], sizes = [1, 49, 32], strides = [1, 1, 1]} : vector<1x49x64xf32> to vector<1x49x32xf32>
    %93 = vector.extract_strided_slice %73 {offsets = [0, 0, 32], sizes = [1, 49, 32], strides = [1, 1, 1]} : vector<1x49x64xf32> to vector<1x49x32xf32>
    "tpu.trace_start"() <{level = 10 : i32, message = "bnd,bmd->bnm"}> : () -> ()
    %cst_23 = arith.constant dense<0.000000e+00> : vector<1x49x49xf32>
    %94 = tpu.matmul %91, %92, %cst_23 {dimension_numbers = #tpu.dot_dimension_numbers<[2], [2], [1], [1], [0, 0, 0, 1, 1, 1], [0], [0]>} : vector<1x49x32xf32>, vector<1x49x32xf32>, vector<1x49x49xf32> -> vector<1x49x49xf32>
    "tpu.trace_stop"() : () -> ()
    %cst_24 = arith.constant 0.176776692 : f32
    %95 = vector.broadcast %cst_24 : f32 to vector<1x49x49xf32>
    %96 = arith.mulf %95, %94 : vector<1x49x49xf32>
    %cst_25 = arith.constant dense<0xFF800000> : vector<1x49xf32>
    %97 = vector.multi_reduction <maximumf>, %96, %cst_25 [2] : vector<1x49x49xf32> to vector<1x49xf32>
    %98 = vector.shape_cast %97 : vector<1x49xf32> to vector<1x49x1xf32>
    %99 = vector.broadcast %98 : vector<1x49x1xf32> to vector<1x49x49xf32>
    %100 = arith.subf %96, %99 : vector<1x49x49xf32>
    %101 = math.exp %100 : vector<1x49x49xf32>
    %cst_26 = arith.constant dense<0.000000e+00> : vector<1x49xf32>
    %102 = vector.multi_reduction <add>, %101, %cst_26 [2] : vector<1x49x49xf32> to vector<1x49xf32>
    %103 = vector.shape_cast %102 : vector<1x49xf32> to vector<1x49x1xf32>
    %104 = tpu.reciprocal %103 {approx = true} : vector<1x49x1xf32> -> vector<1x49x1xf32>
    %105 = vector.broadcast %104 : vector<1x49x1xf32> to vector<1x49x49xf32>
    %106 = arith.mulf %101, %105 : vector<1x49x49xf32>
    "tpu.trace_start"() <{level = 10 : i32, message = "bnm,bmd->bnd"}> : () -> ()
    %cst_27 = arith.constant dense<0.000000e+00> : vector<1x49x32xf32>
    %107 = tpu.matmul %106, %93, %cst_27 {dimension_numbers = #tpu.dot_dimension_numbers<[2], [1], [1], [2], [0, 0, 0, 1, 1, 2], [0], [0]>} : vector<1x49x49xf32>, vector<1x49x32xf32>, vector<1x49x32xf32> -> vector<1x49x32xf32>
    "tpu.trace_stop"() : () -> ()
    %108 = tpu.concatenate %90, %107 in 2 : vector<1x49x32xf32>, vector<1x49x32xf32> -> vector<1x49x64xf32>
    %c0_28 = arith.constant 0 : index
    %c0_29 = arith.constant 0 : index
    %109 = vector.load %arg3[%c0_28, %c0_29] : memref<64x64xf32, #tpu.memory_space<vmem>>, vector<64x64xf32>
    %110 = vector.shape_cast %108 : vector<1x49x64xf32> to vector<49x64xf32>
    %cst_30 = arith.constant dense<0.000000e+00> : vector<49x64xf32>
    %111 = tpu.matmul %110, %109, %cst_30 {dimension_numbers = #tpu.dot_dimension_numbers<[1], [0], [0], [1], [0, 0, 1, 1], [], []>} : vector<49x64xf32>, vector<64x64xf32>, vector<49x64xf32> -> vector<49x64xf32>
    %112 = vector.extract_strided_slice %1 {offsets = [6, 0], sizes = [1, 64], strides = [1, 1]} : vector<8x64xf32> to vector<1x64xf32>
    %113 = vector.extract_strided_slice %1 {offsets = [7, 0], sizes = [1, 64], strides = [1, 1]} : vector<8x64xf32> to vector<1x64xf32>
    %cst_31 = arith.constant dense<0.000000e+00> : vector<49xf32>
    %114 = vector.multi_reduction <add>, %111, %cst_31 [1] : vector<49x64xf32> to vector<49xf32>
    %115 = vector.shape_cast %114 : vector<49xf32> to vector<49x1xf32>
    %cst_32 = arith.constant 6.400000e+01 : f32
    %116 = vector.broadcast %cst_32 : f32 to vector<49x1xf32>
    %117 = arith.divf %115, %116 : vector<49x1xf32>
    %118 = vector.broadcast %117 : vector<49x1xf32> to vector<49x64xf32>
    %119 = arith.subf %111, %118 : vector<49x64xf32>
    %120 = arith.mulf %119, %119 : vector<49x64xf32>
    %cst_33 = arith.constant dense<0.000000e+00> : vector<49xf32>
    %121 = vector.multi_reduction <add>, %120, %cst_33 [1] : vector<49x64xf32> to vector<49xf32>
    %122 = vector.shape_cast %121 : vector<49xf32> to vector<49x1xf32>
    %cst_34 = arith.constant 6.400000e+01 : f32
    %123 = vector.broadcast %cst_34 : f32 to vector<49x1xf32>
    %124 = arith.divf %122, %123 : vector<49x1xf32>
    %cst_35 = arith.constant 9.99999997E-7 : f32
    %125 = vector.broadcast %cst_35 : f32 to vector<49x1xf32>
    %126 = arith.addf %124, %125 : vector<49x1xf32>
    %127 = math.rsqrt %126 : vector<49x1xf32>
    %128 = vector.broadcast %127 : vector<49x1xf32> to vector<49x64xf32>
    %129 = arith.mulf %119, %128 : vector<49x64xf32>
    %130 = vector.broadcast %112 : vector<1x64xf32> to vector<49x64xf32>
    %131 = arith.mulf %129, %130 : vector<49x64xf32>
    %132 = vector.broadcast %113 : vector<1x64xf32> to vector<49x64xf32>
    %133 = arith.addf %131, %132 : vector<49x64xf32>
    %c0_36 = arith.constant 0 : index
    %c0_37 = arith.constant 0 : index
    %c0_38 = arith.constant 0 : index
    %134 = vector.load %arg4[%c0_36, %c0_37, %c0_38] : memref<1x49x64xf32, #tpu.memory_space<vmem>>, vector<1x49x64xf32>
    %135 = vector.shape_cast %134 : vector<1x49x64xf32> to vector<49x64xf32>
    %136 = vector.shape_cast %133 : vector<49x64xf32> to vector<1x49x64xf32>
    tpu.vector_store %arg4[%c0_36, %c0_37, %c0_38], %136 {strides = array<i32>} : memref<1x49x64xf32, #tpu.memory_space<vmem>>, vector<1x49x64xf32>,
    return
  }
  func.func @transform_0(%arg0: i32) -> (i32, i32, i32) {
    %c0_i32 = arith.constant 0 : i32
    %c0_i32_0 = arith.constant 0 : i32
    %c0_i32_1 = arith.constant 0 : i32
    return %arg0, %c0_i32, %c0_i32_0 : i32, i32, i32
  }
  func.func @transform_1(%arg0: i32) -> (i32, i32) {
    %c0_i32 = arith.constant 0 : i32
    %c0_i32_0 = arith.constant 0 : i32
    %c0_i32_1 = arith.constant 0 : i32
    return %c0_i32, %c0_i32_0 : i32, i32
  }
  func.func @transform_2(%arg0: i32) -> (i32, i32) {
    %c0_i32 = arith.constant 0 : i32
    %c0_i32_0 = arith.constant 0 : i32
    %c0_i32_1 = arith.constant 0 : i32
    return %c0_i32, %c0_i32_0 : i32, i32
  }
  func.func @transform_3(%arg0: i32) -> (i32, i32, i32) {
    %c0_i32 = arith.constant 0 : i32
    %c0_i32_0 = arith.constant 0 : i32
    %c0_i32_1 = arith.constant 0 : i32
    return %arg0, %c0_i32, %c0_i32_0 : i32, i32, i32
  }
}

module attributes {stable_mosaic.version = 11 : i64} {
  func.func @_gating_kernel(%arg0: i32, %arg1: memref<64x196xf32, #tpu.memory_space<vmem>>, %arg2: memref<64x49xf32, #tpu.memory_space<vmem>>, %arg3: memref<49x196xf32, #tpu.memory_space<vmem>>, %arg4: memref<64x196xf32, #tpu.memory_space<vmem>>) attributes {dimension_semantics = [#tpu.dimension_semantics<parallel>], iteration_bounds = array<i64: 2>, scalar_prefetch = 0 : i64, scratch_operands = 0 : i64, tpu.core_type = #tpu.core_type<tc>, window_params = [{transform_indices = @transform_0, window_bounds = array<i64: 64, 196>}, {transform_indices = @transform_1, window_bounds = array<i64: 64, 49>}, {pipeline_mode = #tpu.pipeline_mode<synchronous>, transform_indices = @transform_2, window_bounds = array<i64: 49, 196>}, {transform_indices = @transform_3, window_bounds = array<i64: 64, 196>}]} {
    %c0 = arith.constant 0 : index
    %c0_0 = arith.constant 0 : index
    %0 = vector.load %arg1[%c0, %c0_0] : memref<64x196xf32, #tpu.memory_space<vmem>>, vector<64x196xf32>
    %c0_1 = arith.constant 0 : index
    %c0_2 = arith.constant 0 : index
    %1 = vector.load %arg2[%c0_1, %c0_2] : memref<64x49xf32, #tpu.memory_space<vmem>>, vector<64x49xf32>
    %c0_3 = arith.constant 0 : index
    %c0_4 = arith.constant 0 : index
    %2 = vector.load %arg3[%c0_3, %c0_4] : memref<49x196xf32, #tpu.memory_space<vmem>>, vector<49x196xf32>
    %cst = arith.constant dense<0.000000e+00> : vector<64x196xf32>
    %3 = tpu.matmul %1, %2, %cst {dimension_numbers = #tpu.dot_dimension_numbers<[1], [0], [0], [1], [0, 0, 1, 1], [], []>} : vector<64x49xf32>, vector<49x196xf32>, vector<64x196xf32> -> vector<64x196xf32>
    %4 = arith.addf %3, %0 : vector<64x196xf32>
    %5 = arith.negf %4 : vector<64x196xf32>
    %6 = math.exp %5 : vector<64x196xf32>
    %cst_5 = arith.constant 1.000000e+00 : f32
    %7 = vector.broadcast %cst_5 : f32 to vector<64x196xf32>
    %8 = arith.addf %7, %6 : vector<64x196xf32>
    %9 = arith.divf %7, %8 : vector<64x196xf32>
    %10 = arith.mulf %0, %9 : vector<64x196xf32>
    %c0_6 = arith.constant 0 : index
    %c0_7 = arith.constant 0 : index
    %11 = vector.load %arg4[%c0_6, %c0_7] : memref<64x196xf32, #tpu.memory_space<vmem>>, vector<64x196xf32>
    tpu.vector_store %arg4[%c0_6, %c0_7], %10 {strides = array<i32>} : memref<64x196xf32, #tpu.memory_space<vmem>>, vector<64x196xf32>,
    return
  }
  func.func @transform_0(%arg0: i32) -> (i32, i32) {
    %c0_i32 = arith.constant 0 : i32
    %c0_i32_0 = arith.constant 0 : i32
    return %arg0, %c0_i32 : i32, i32
  }
  func.func @transform_1(%arg0: i32) -> (i32, i32) {
    %c0_i32 = arith.constant 0 : i32
    %c0_i32_0 = arith.constant 0 : i32
    return %arg0, %c0_i32 : i32, i32
  }
  func.func @transform_2(%arg0: i32) -> (i32, i32) {
    %c0_i32 = arith.constant 0 : i32
    %c0_i32_0 = arith.constant 0 : i32
    %c0_i32_1 = arith.constant 0 : i32
    return %c0_i32, %c0_i32_0 : i32, i32
  }
  func.func @transform_3(%arg0: i32) -> (i32, i32) {
    %c0_i32 = arith.constant 0 : i32
    %c0_i32_0 = arith.constant 0 : i32
    return %arg0, %c0_i32 : i32, i32
  }
}

</mosaic_0001>

<llo_original>
// kernel: silutopsis_forward.3
$region0: #{silutopsis_forward.3}
  #allocation0 [shape = 'u32[]', space=smem, size = 0x4, offset = 0x4, fixed_abs, tag = 'smem constant byte address 0x4 - core index']
  #allocation1 [shape = 'u32[144,128]{1,0:T(1,128)}', space=vmem, size = 0x12000, scoped, tag = 'internal scratch']
  %s0 = inlined_call_operand.vmem [shape: f32[128,196], index: 0, kind: input, shape index: {}]
  %s1 = inlined_call_operand.vmem [shape: f32[128,49], index: 1, kind: input, shape index: {}]
  %s2 = inlined_call_operand.vmem [shape: f32[49,196], index: 2, kind: input, shape index: {}]
  %s3 = inlined_call_operand.vmem [shape: f32[128,196], index: 3, kind: output, shape index: {}]
  %s4 = sld [smem:[#allocation0]]
  $region45: #{silutopsis_forward.3} parent=0
    _
  %s6 = ssub.s32 1, %s4
  %s7 = scalar_select 0, %s6, %s4
  loop: start=0, step=1, limit=4
  $region2: #{silutopsis_forward.3} parent=0 // loop_pre_header
    _
  $region3: #{silutopsis_forward.3} parent=0 // loop_header
    %s9 = sphi 0, %s13
    %p10 = scmp.ge.s32.totalorder %s9, 4
    %s19 = sphi 0, %s21
    %s22 = sphi 0, %s19
    %s23 = sphi 0, %s22
    %s39 = sphi 0, %s23
    %s45 = sphi 0, %s47
    %s48 = sphi 0, %s45
    %s49 = sphi 0, %s48
    %s65 = sphi 0, %s49
    %s69 = sphi 0, %s69
    %s71 = sphi 0, %s69
    %s72 = sphi 0, %s71
    %s86 = sphi 0, %s72
    %s92 = sphi 0, %s94
    %s95 = sphi 0, %s92
    %s96 = sphi 0, %s95
    %s112 = sphi 0, %s96
  $region4: #{silutopsis_forward.3} parent=0 // loop_header_branch
    %12 = sbr.rel (%p10) target = $region8
  $region5: #{silutopsis_forward.3} parent=0 // loop_body
    %s14 = ssub.s32 %s9, 1
    %s15 = ssub.s32 %s9, 2
    %s16 = sadd.s32 %s9, 1
    %s17 = ssub.s32 %s9, %s16
    %p18 = scmp.eq.s32.totalorder %s17, 0
    %s20 = sadd.s32 %s19, 1
    %s21 = scalar_select %p18, %s19, %s20
    %p24 = pneg %p18
    %p25 = scmp.eq.s32.totalorder %s9, 1
    %p26 = por %p24, %p25
    %p27 = scmp.ne.s32.totalorder %s19, %s22
    %p28 = scmp.eq.s32.totalorder %s9, 0
    %p29 = por %p27, %p28
    %p30 = scmp.ne.s32.totalorder %s19, %s22
    %p31 = scmp.eq.s32.totalorder %s14, 1
    %p32 = por %p30, %p31
    %p33 = scmp.ne.s32.totalorder %s22, %s23
    %p34 = scmp.eq.s32.totalorder %s14, 0
    %p35 = por %p33, %p34
    %p36 = scmp.ne.s32.totalorder %s22, %s23
    %p37 = scmp.eq.s32.totalorder %s15, 1
    %p38 = por %p36, %p37
    %p40 = scmp.ne.s32.totalorder %s23, %s39
    %p41 = scmp.eq.s32.totalorder %s15, 0
    %p42 = por %p40, %p41
    %s43 = ssub.s32 %s9, %s16
    %p44 = scmp.eq.s32.totalorder %s43, 0
    %s46 = sadd.s32 %s45, 1
    %s47 = scalar_select %p44, %s45, %s46
    %p50 = pneg %p44
    %p51 = scmp.eq.s32.totalorder %s9, 1
    %p52 = por %p50, %p51
    %p53 = scmp.ne.s32.totalorder %s45, %s48
    %p54 = scmp.eq.s32.totalorder %s9, 0
    %p55 = por %p53, %p54
    %p56 = scmp.ne.s32.totalorder %s45, %s48
    %p57 = scmp.eq.s32.totalorder %s14, 1
    %p58 = por %p56, %p57
    %p59 = scmp.ne.s32.totalorder %s48, %s49
    %p60 = scmp.eq.s32.totalorder %s14, 0
    %p61 = por %p59, %p60
    %p62 = scmp.ne.s32.totalorder %s48, %s49
    %p63 = scmp.eq.s32.totalorder %s15, 1
    %p64 = por %p62, %p63
    %p66 = scmp.ne.s32.totalorder %s49, %s65
    %p67 = scmp.eq.s32.totalorder %s15, 0
    %p68 = por %p66, %p67
    %s70 = sadd.s32 %s69, 1
    %p73 = scmp.eq.s32.totalorder %s9, 1
    %p74 = scmp.ne.s32.totalorder %s69, %s71
    %p75 = scmp.eq.s32.totalorder %s9, 0
    %p76 = por %p74, %p75
    %p77 = scmp.ne.s32.totalorder %s69, %s71
    %p78 = scmp.eq.s32.totalorder %s14, 1
    %p79 = por %p77, %p78
    %p80 = scmp.ne.s32.totalorder %s71, %s72
    %p81 = scmp.eq.s32.totalorder %s14, 0
    %p82 = por %p80, %p81
    %p83 = scmp.ne.s32.totalorder %s71, %s72
    %p84 = scmp.eq.s32.totalorder %s15, 1
    %p85 = por %p83, %p84
    %p87 = scmp.ne.s32.totalorder %s72, %s86
    %p88 = scmp.eq.s32.totalorder %s15, 0
    %p89 = por %p87, %p88
    %s90 = ssub.s32 %s9, %s16
    %p91 = scmp.eq.s32.totalorder %s90, 0
    %s93 = sadd.s32 %s92, 1
    %s94 = scalar_select %p91, %s92, %s93
    %p97 = pneg %p91
    %p98 = scmp.eq.s32.totalorder %s9, 1
    %p99 = por %p97, %p98
    %p100 = scmp.ne.s32.totalorder %s92, %s95
    %p101 = scmp.eq.s32.totalorder %s9, 0
    %p102 = por %p100, %p101
    %p103 = scmp.ne.s32.totalorder %s92, %s95
    %p104 = scmp.eq.s32.totalorder %s14, 1
    %p105 = por %p103, %p104
    %p106 = scmp.ne.s32.totalorder %s95, %s96
    %p107 = scmp.eq.s32.totalorder %s14, 0
    %p108 = por %p106, %p107
    %p109 = scmp.ne.s32.totalorder %s95, %s96
    %p110 = scmp.eq.s32.totalorder %s15, 1
    %p111 = por %p109, %p110
    %p113 = scmp.ne.s32.totalorder %s96, %s112
    %p114 = scmp.eq.s32.totalorder %s15, 0
    %p115 = por %p113, %p114
    %p116 = scmp.le.s32.totalorder 1, %s9
    %p117 = scmp.lt.s32.totalorder %s9, 3
    %p118 = pnand %p116, %p117
    %p119 = pneg %p118
    // Predicated region
    $region9: #{silutopsis_forward.3} parent=5 // pred_check
      _
    $region10: #{silutopsis_forward.3} parent=5 // pred_check_branch
      %121 = sbr.rel (%p118) target = $region12
    $region11: #{silutopsis_forward.3} parent=5 // pred_region
      %s122 = ssub.s32 %s9, 1
      // Predicated region
      $region13: #{silutopsis_forward.3} parent=11 // pred_check
        %p123 = pneg %p82
      $region14: #{silutopsis_forward.3} parent=11 // pred_check_branch
        %125 = sbr.rel (%p123) target = $region16
      $region15: #{silutopsis_forward.3} parent=11 // pred_region
        _
      $region16: #{silutopsis_forward.3} parent=11 // pred_fallthru
        _
    $region12: #{silutopsis_forward.3} parent=5 // pred_fallthru
      _
    %p126 = scmp.lt.s32.totalorder %s9, 2
    // Predicated region
    $region17: #{silutopsis_forward.3} parent=5 // pred_check
      %p127 = pneg %p126
    $region18: #{silutopsis_forward.3} parent=5 // pred_check_branch
      %129 = sbr.rel (%p127) target = $region20
    $region19: #{silutopsis_forward.3} parent=5 // pred_region
      // Predicated region
      $region21: #{silutopsis_forward.3} parent=19 // pred_check
        %p130 = pneg %p29
      $region22: #{silutopsis_forward.3} parent=19 // pred_check_branch
        %132 = sbr.rel (%p130) target = $region24
      $region23: #{silutopsis_forward.3} parent=19 // pred_region
        %s133 = smul.u32 8, %s9
        %p134 = scmp.lt.s32.totalorder %s133, 15
        %s135 = scalar_select %p134, %s133, 15
        %s136 = smul.addr %s135, 2
        %s137 = smul.addr %s136, 8
        %s138 = scalar_lea.vmem %s0, %s137
        %s139 = smul.u32 8, %s9
      $region24: #{silutopsis_forward.3} parent=19 // pred_fallthru
        _
      // Predicated region
      $region25: #{silutopsis_forward.3} parent=19 // pred_check
        %p140 = pneg %p55
      $region26: #{silutopsis_forward.3} parent=19 // pred_check_branch
        %142 = sbr.rel (%p140) target = $region28
      $region27: #{silutopsis_forward.3} parent=19 // pred_region
        %s143 = smul.u32 8, %s9
        %p144 = scmp.lt.s32.totalorder %s143, 15
        %s145 = scalar_select %p144, %s143, 15
        %s146 = smul.addr %s145, 8
        %s147 = scalar_lea.vmem %s1, %s146
        %s148 = smul.u32 8, %s9
      $region28: #{silutopsis_forward.3} parent=19 // pred_fallthru
        _
    $region20: #{silutopsis_forward.3} parent=5 // pred_fallthru
      _
    %p149 = scmp.le.s32.totalorder 1, %s9
    %p150 = scmp.lt.s32.totalorder %s9, 3
    %p151 = pnand %p149, %p150
    %p152 = pneg %p151
    // Predicated region
    $region29: #{silutopsis_forward.3} parent=5 // pred_check
      _
    $region30: #{silutopsis_forward.3} parent=5 // pred_check_branch
      %154 = sbr.rel (%p151) target = $region32
    $region31: #{silutopsis_forward.3} parent=5 // pred_region
      %s155 = ssub.s32 %s9, 1
      %s156 = smul.u32 8, %s14
      %p157 = scmp.lt.s32.totalorder %s156, 15
      %s158 = scalar_select %p157, %s156, 15
      %s159 = smul.addr %s158, 2
      %s160 = smul.addr %s159, 8
      %s161 = scalar_lea.vmem %s0, %s160
      %p162 = pneg %p35
      %p163 = pneg %p32
      %s164 = smul.u32 8, %s14
      %p165 = scmp.lt.s32.totalorder %s164, 15
      %s166 = scalar_select %p165, %s164, 15
      %s167 = smul.addr %s166, 8
      %s168 = scalar_lea.vmem %s1, %s167
      %p169 = pneg %p61
      %p170 = pneg %p58
      %p171 = pneg %p82
      %p172 = pneg %p79
      %p173 = pneg %p108
      %p174 = pneg %p105
      %s175 = smul.u32 8, %s14
      %p176 = scmp.lt.s32.totalorder %s175, 15
      %s177 = scalar_select %p176, %s175, 15
      %s178 = smul.addr %s177, 2
      %s179 = smul.addr %s178, 8
      %s180 = scalar_lea.vmem %s3, %s179
      %s181 = smul.u32 8, %s14
      %p182 = scmp.lt.s32.totalorder %s181, 15
      %s183 = scalar_select %p182, %s181, 15
      %s184 = smul.addr %s183, 2
      %s185 = smul.addr %s184, 8
      %s186 = scalar_lea.vmem %s0, %s185
      %s187 = smul.u32 8, %s14
      %s188 = smul.u32 8, %s14
      %p189 = scmp.lt.s32.totalorder %s188, 15
      %s190 = scalar_select %p189, %s188, 15
      %s191 = smul.addr %s190, 8
      %s192 = scalar_lea.vmem %s1, %s191
      %s193 = smul.u32 8, %s14
      %s194 = smul.u32 8, %s14
      %p195 = scmp.lt.s32.totalorder %s194, 15
      %s196 = scalar_select %p195, %s194, 15
      %s197 = smul.addr %s196, 2
      %s198 = smul.addr %s197, 8
      %s199 = scalar_lea.vmem %s3, %s198
      %s200 = smul.u32 8, %s14
      %v201 = vld [vmem:[%s186] sm:$0xff]
      %v202 = vld [vmem:[%s186 + $0x8] sm:$0xff]
      %v203 = vld [vmem:[%s186 + $0x10] sm:$0xff]
      %v204 = vld [vmem:[%s186 + $0x18] sm:$0xff]
      %v205 = vld [vmem:[%s186 + $0x20] sm:$0xff]
      %v206 = vld [vmem:[%s186 + $0x28] sm:$0xff]
      %v207 = vld [vmem:[%s186 + $0x30] sm:$0xff]
      %v208 = vld [vmem:[%s186 + $0x38] sm:$0xff]
      %v209 = vld [vmem:[%s186 + $0x40] sm:$0xff]
      %v210 = vld [vmem:[%s186 + $0x48] sm:$0xff]
      %v211 = vld [vmem:[%s186 + $0x50] sm:$0xff]
      %v212 = vld [vmem:[%s186 + $0x58] sm:$0xff]
      %v213 = vld [vmem:[%s186 + $0x60] sm:$0xff]
      %v214 = vld [vmem:[%s186 + $0x68] sm:$0xff]
      %v215 = vld [vmem:[%s186 + $0x70] sm:$0xff]
      %v216 = vld [vmem:[%s186 + $0x78] sm:$0xff]
      %v217 = vld [vmem:[%s192] sm:$0xff]
      %v218 = vld [vmem:[%s192 + $0x8] sm:$0xff]
      %v219 = vld [vmem:[%s192 + $0x10] sm:$0xff]
      %v220 = vld [vmem:[%s192 + $0x18] sm:$0xff]
      %v221 = vld [vmem:[%s192 + $0x20] sm:$0xff]
      %v222 = vld [vmem:[%s192 + $0x28] sm:$0xff]
      %v223 = vld [vmem:[%s192 + $0x30] sm:$0xff]
      %v224 = vld [vmem:[%s192 + $0x38] sm:$0xff]
      %v225 = vld [vmem:[%s2] sm:$0xff]
      %v226 = vld [vmem:[%s2 + $0x8] sm:$0xff]
      %v227 = vld [vmem:[%s2 + $0x10] sm:$0xff]
      %v228 = vld [vmem:[%s2 + $0x18] sm:$0xff]
      %v229 = vld [vmem:[%s2 + $0x20] sm:$0xff]
      %v230 = vld [vmem:[%s2 + $0x28] sm:$0xff]
      %v231 = vld [vmem:[%s2 + $0x30] sm:$0xff]
      %v232 = vld [vmem:[%s2 + $0x38] sm:$0xff]
      %v233 = vld [vmem:[%s2 + $0x40] sm:$0xff]
      %v234 = vld [vmem:[%s2 + $0x48] sm:$0xff]
      %v235 = vld [vmem:[%s2 + $0x50] sm:$0xff]
      %v236 = vld [vmem:[%s2 + $0x58] sm:$0xff]
      %v237 = vld [vmem:[%s2 + $0x60] sm:$0x1]
      %v238 = vld [vmem:[%s2 + $0x68] sm:$0x1]
      %vm239 = vcmask 400384
      %v241 = vsel %vm239, %v217, 0
      %v244 = vsel %vm239, %v218, 0
      %v247 = vsel %vm239, %v219, 0
      %v250 = vsel %vm239, %v220, 0
      %v253 = vsel %vm239, %v221, 0
      %v256 = vsel %vm239, %v222, 0
      %v259 = vsel %vm239, %v223, 0
      %v262 = vsel %vm239, %v224, 0
      %vm264 = vcmask 1040384
      %v266 = vsel %vm264, %v237, 0
      %v269 = vsel %vm264, %v238, 0
      %271 = vmatprep.subr.mxu0 0.0
      %272 = vmatpush1.msra.mxu0 0.0
      %273 = vmatprep.subr.mxu0 0.0
      %274 = vmatpush1.msra.mxu0 0.0
      %275 = vmatprep.subr.mxu0 0.0
      %276 = vmatpush1.msra.mxu0 0.0
      %277 = vmatprep.subr.mxu0 0.0
      %278 = vmatpush1.msra.mxu0 0.0
      %279 = vmatprep.subr.mxu0 0.0
      %280 = vmatpush1.msra.mxu0 0.0
      %281 = vmatprep.subr.mxu0 0.0
      %282 = vmatpush1.msra.mxu0 0.0
      %283 = vmatprep.subr.mxu0 0.0
      %284 = vmatpush1.msra.mxu0 0.0
      %285 = vmatprep.subr.mxu0 0.0
      %286 = vmatpush1.msra.mxu0 0.0
      %287 = vmatprep.subr.mxu0 0.0
      %288 = vmatpush1.msra.mxu0 0.0
      %289 = vmatprep.subr.mxu0 %v269
      %290 = vmatpush1.msra.mxu0 %v266
      %291 = vmatprep.subr.mxu0 %v236
      %292 = vmatpush1.msra.mxu0 %v235
      %293 = vmatprep.subr.mxu0 %v234
      %294 = vmatpush1.msra.mxu0 %v233
      %295 = vmatprep.subr.mxu0 %v232
      %296 = vmatpush1.msra.mxu0 %v231
      %297 = vmatprep.subr.mxu0 %v230
      %298 = vmatpush1.msra.mxu0 %v229
      %299 = vmatprep.subr.mxu0 %v228
      %300 = vmatpush1.msra.mxu0 %v227
      %301 = vmatprep.subr.mxu0 %v226
      %302 = vmatpush1.msra.mxu0 %v225
      %303 = vmatprep.subr.mxu0 0.0
      %304 = vmatpush2.msra.mxu0 0.0
      %305 = vmatprep.subr.mxu0 0.0
      %306 = vmatpush2.msra.mxu0 0.0
      %307 = vmatprep.subr.mxu0 0.0
      %308 = vmatpush2.msra.mxu0 0.0
      %309 = vmatprep.subr.mxu0 0.0
      %310 = vmatpush2.msra.mxu0 0.0
      %311 = vmatprep.subr.mxu0 0.0
      %312 = vmatpush2.msra.mxu0 0.0
      %313 = vmatprep.subr.mxu0 0.0
      %314 = vmatpush2.msra.mxu0 0.0
      %315 = vmatprep.subr.mxu0 0.0
      %316 = vmatpush2.msra.mxu0 0.0
      %317 = vmatprep.subr.mxu0 0.0
      %318 = vmatpush2.msra.mxu0 0.0
      %319 = vmatprep.subr.mxu0 0.0
      %320 = vmatpush2.msra.mxu0 0.0
      %321 = vmatprep.subr.mxu0 0.0
      %322 = vmatpush2.msra.mxu0 0.0
      %323 = vmatprep.subr.mxu0 0.0
      %324 = vmatpush2.msra.mxu0 0.0
      %325 = vmatprep.subr.mxu0 0.0
      %326 = vmatpush2.msra.mxu0 0.0
      %327 = vmatprep.subr.mxu0 0.0
      %328 = vmatpush2.msra.mxu0 0.0
      %329 = vmatprep.subr.mxu0 0.0
      %330 = vmatpush2.msra.mxu0 0.0
      %331 = vmatprep.subr.mxu0 0.0
      %332 = vmatpush2.msra.mxu0 0.0
      %333 = vmatprep.subr.mxu0 0.0
      %334 = vmatpush2.msra.mxu0 0.0
      %335 = vmatprep.mubr.f32.mxu0 0.0
      %336 = vmatmul.mubr.f32.gmra.mxu0 %v241
      %v337 = vpop.f32.mrf.mxu0
      %v338 = vadd.f32 %v201, %v337
      %v339 = vpop.f32.mrf.mxu0
      %v340 = vadd.f32 %v202, %v339
      %341 = vmatprep.mubr.f32.mxu0 0.0
      %342 = vmatmul.mubr.f32.gmra.mxu0 %v244
      %v343 = vpop.f32.mrf.mxu0
      %v344 = vadd.f32 %v203, %v343
      %v345 = vpop.f32.mrf.mxu0
      %v346 = vadd.f32 %v204, %v345
      %347 = vmatprep.mubr.f32.mxu0 0.0
      %348 = vmatmul.mubr.f32.gmra.mxu0 %v247
      %v349 = vpop.f32.mrf.mxu0
      %v350 = vadd.f32 %v205, %v349
      %v351 = vpop.f32.mrf.mxu0
      %v352 = vadd.f32 %v206, %v351
      %353 = vmatprep.mubr.f32.mxu0 0.0
      %354 = vmatmul.mubr.f32.gmra.mxu0 %v250
      %v355 = vpop.f32.mrf.mxu0
      %v356 = vadd.f32 %v207, %v355
      %v357 = vpop.f32.mrf.mxu0
      %v358 = vadd.f32 %v208, %v357
      %359 = vmatprep.mubr.f32.mxu0 0.0
      %360 = vmatmul.mubr.f32.gmra.mxu0 %v253
      %v361 = vpop.f32.mrf.mxu0
      %v362 = vadd.f32 %v209, %v361
      %v363 = vpop.f32.mrf.mxu0
      %v364 = vadd.f32 %v210, %v363
      %365 = vmatprep.mubr.f32.mxu0 0.0
      %366 = vmatmul.mubr.f32.gmra.mxu0 %v256
      %v367 = vpop.f32.mrf.mxu0
      %v368 = vadd.f32 %v211, %v367
      %v369 = vpop.f32.mrf.mxu0
      %v370 = vadd.f32 %v212, %v369
      %371 = vmatprep.mubr.f32.mxu0 0.0
      %372 = vmatmul.mubr.f32.gmra.mxu0 %v259
      %v373 = vpop.f32.mrf.mxu0
      %v374 = vadd.f32 %v213, %v373
      %v375 = vpop.f32.mrf.mxu0
      %v376 = vadd.f32 %v214, %v375
      %377 = vmatprep.mubr.f32.mxu0 0.0
      %378 = vmatmul.mubr.f32.gmra.mxu0 %v262
      %v379 = vpop.f32.mrf.mxu0
      %v380 = vadd.f32 %v215, %v379
      %v381 = vpop.f32.mrf.mxu0
      %v382 = vadd.f32 %v216, %v381
      %383 = vdwg.mxu0
      %v384 = vxor.u32 %v338, 2147483648
      %v385 = vxor.u32 %v340, 2147483648
      %v386 = vxor.u32 %v344, 2147483648
      %v387 = vxor.u32 %v346, 2147483648
      %v388 = vxor.u32 %v350, 2147483648
      %v389 = vxor.u32 %v352, 2147483648
      %v390 = vxor.u32 %v356, 2147483648
      %v391 = vxor.u32 %v358, 2147483648
      %v392 = vxor.u32 %v362, 2147483648
      %v393 = vxor.u32 %v364, 2147483648
      %v394 = vxor.u32 %v368, 2147483648
      %v395 = vxor.u32 %v370, 2147483648
      %v396 = vxor.u32 %v374, 2147483648
      %v397 = vxor.u32 %v376, 2147483648
      %v398 = vxor.u32 %v380, 2147483648
      %v399 = vxor.u32 %v382, 2147483648
      %v400 = vmul.f32 %v384, 1.442695
      %v401 = vpow.pop %v400
      %v402 = vmul.f32 %v385, 1.442695
      %v403 = vpow.pop %v402
      %v404 = vmul.f32 %v386, 1.442695
      %v405 = vpow.pop %v404
      %v406 = vmul.f32 %v387, 1.442695
      %v407 = vpow.pop %v406
      %v408 = vmul.f32 %v388, 1.442695
      %v409 = vpow.pop %v408
      %v410 = vmul.f32 %v389, 1.442695
      %v411 = vpow.pop %v410
      %v412 = vmul.f32 %v390, 1.442695
      %v413 = vpow.pop %v412
      %v414 = vmul.f32 %v391, 1.442695
      %v415 = vpow.pop %v414
      %v416 = vmul.f32 %v392, 1.442695
      %v417 = vpow.pop %v416
      %v418 = vmul.f32 %v393, 1.442695
      %v419 = vpow.pop %v418
      %v420 = vmul.f32 %v394, 1.442695
      %v421 = vpow.pop %v420
      %v422 = vmul.f32 %v395, 1.442695
      %v423 = vpow.pop %v422
      %v424 = vmul.f32 %v396, 1.442695
      %v425 = vpow.pop %v424
      %v426 = vmul.f32 %v397, 1.442695
      %v427 = vpow.pop %v426
      %v428 = vmul.f32 %v398, 1.442695
      %v429 = vpow.pop %v428
      %v430 = vmul.f32 %v399, 1.442695
      %v431 = vpow.pop %v430
      %v432 = vadd.f32 %v401, 1.0
      %v433 = vadd.f32 %v403, 1.0
      %v434 = vadd.f32 %v405, 1.0
      %v435 = vadd.f32 %v407, 1.0
      %v436 = vadd.f32 %v409, 1.0
      %v437 = vadd.f32 %v411, 1.0
      %v438 = vadd.f32 %v413, 1.0
      %v439 = vadd.f32 %v415, 1.0
      %v440 = vadd.f32 %v417, 1.0
      %v441 = vadd.f32 %v419, 1.0
      %v442 = vadd.f32 %v421, 1.0
      %v443 = vadd.f32 %v423, 1.0
      %v444 = vadd.f32 %v425, 1.0
      %v445 = vadd.f32 %v427, 1.0
      %v446 = vadd.f32 %v429, 1.0
      %v447 = vadd.f32 %v431, 1.0
      %v448 = vrcp.pop %v432
      %v449 = vmul.f32 1.0, %v448
      %v450 = vrcp.pop %v433
      %v451 = vmul.f32 1.0, %v450
      %v452 = vrcp.pop %v434
      %v453 = vmul.f32 1.0, %v452
      %v454 = vrcp.pop %v435
      %v455 = vmul.f32 1.0, %v454
      %v456 = vrcp.pop %v436
      %v457 = vmul.f32 1.0, %v456
      %v458 = vrcp.pop %v437
      %v459 = vmul.f32 1.0, %v458
      %v460 = vrcp.pop %v438
      %v461 = vmul.f32 1.0, %v460
      %v462 = vrcp.pop %v439
      %v463 = vmul.f32 1.0, %v462
      %v464 = vrcp.pop %v440
      %v465 = vmul.f32 1.0, %v464
      %v466 = vrcp.pop %v441
      %v467 = vmul.f32 1.0, %v466
      %v468 = vrcp.pop %v442
      %v469 = vmul.f32 1.0, %v468
      %v470 = vrcp.pop %v443
      %v471 = vmul.f32 1.0, %v470
      %v472 = vrcp.pop %v444
      %v473 = vmul.f32 1.0, %v472
      %v474 = vrcp.pop %v445
      %v475 = vmul.f32 1.0, %v474
      %v476 = vrcp.pop %v446
      %v477 = vmul.f32 1.0, %v476
      %v478 = vrcp.pop %v447
      %v479 = vmul.f32 1.0, %v478
      %v480 = vmul.f32 %v201, %v449
      %v481 = vmul.f32 %v202, %v451
      %v482 = vmul.f32 %v203, %v453
      %v483 = vmul.f32 %v204, %v455
      %v484 = vmul.f32 %v205, %v457
      %v485 = vmul.f32 %v206, %v459
      %v486 = vmul.f32 %v207, %v461
      %v487 = vmul.f32 %v208, %v463
      %v488 = vmul.f32 %v209, %v465
      %v489 = vmul.f32 %v210, %v467
      %v490 = vmul.f32 %v211, %v469
      %v491 = vmul.f32 %v212, %v471
      %v492 = vmul.f32 %v213, %v473
      %v493 = vmul.f32 %v214, %v475
      %v494 = vmul.f32 %v215, %v477
      %v495 = vmul.f32 %v216, %v479
      %496 = vst [vmem:[%s199] sm:$0xff] %v480
      %vm497 = vcmask 556032
      %498 = vst.msk [vmem:[%s199 + $0x8] sm:$0xff] %vm497, %v481
      %499 = vst [vmem:[%s199 + $0x10] sm:$0xff] %v482
      %500 = vst.msk [vmem:[%s199 + $0x18] sm:$0xff] %vm497, %v483
      %501 = vst [vmem:[%s199 + $0x20] sm:$0xff] %v484
      %502 = vst.msk [vmem:[%s199 + $0x28] sm:$0xff] %vm497, %v485
      %503 = vst [vmem:[%s199 + $0x30] sm:$0xff] %v486
      %504 = vst.msk [vmem:[%s199 + $0x38] sm:$0xff] %vm497, %v487
      %505 = vst [vmem:[%s199 + $0x40] sm:$0xff] %v488
      %506 = vst.msk [vmem:[%s199 + $0x48] sm:$0xff] %vm497, %v489
      %507 = vst [vmem:[%s199 + $0x50] sm:$0xff] %v490
      %508 = vst.msk [vmem:[%s199 + $0x58] sm:$0xff] %vm497, %v491
      %509 = vst [vmem:[%s199 + $0x60] sm:$0xff] %v492
      %510 = vst.msk [vmem:[%s199 + $0x68] sm:$0xff] %vm497, %v493
      %511 = vst [vmem:[%s199 + $0x70] sm:$0xff] %v494
      %512 = vst.msk [vmem:[%s199 + $0x78] sm:$0xff] %vm497, %v495
      %s513 = smul.u32 8, %s14
      %p514 = scmp.lt.s32.totalorder %s513, 15
      %s515 = scalar_select %p514, %s513, 15
      %s516 = smul.addr %s515, 2
      %s517 = smul.addr %s516, 8
      %s518 = scalar_lea.vmem %s3, %s517
      // Predicated region
      $region33: #{silutopsis_forward.3} parent=31 // pred_check
        %p519 = pneg %p105
      $region34: #{silutopsis_forward.3} parent=31 // pred_check_branch
        %521 = sbr.rel (%p519) target = $region36
      $region35: #{silutopsis_forward.3} parent=31 // pred_region
        %s522 = smul.u32 8, %s14
      $region36: #{silutopsis_forward.3} parent=31 // pred_fallthru
        _
    $region32: #{silutopsis_forward.3} parent=5 // pred_fallthru
      _
    %p523 = scmp.le.s32.totalorder 2, %s9
    // Predicated region
    $region37: #{silutopsis_forward.3} parent=5 // pred_check
      %p524 = pneg %p523
    $region38: #{silutopsis_forward.3} parent=5 // pred_check_branch
      %526 = sbr.rel (%p524) target = $region40
    $region39: #{silutopsis_forward.3} parent=5 // pred_region
      %s527 = ssub.s32 %s9, 2
      // Predicated region
      $region41: #{silutopsis_forward.3} parent=39 // pred_check
        %p528 = pneg %p111
      $region42: #{silutopsis_forward.3} parent=39 // pred_check_branch
        %530 = sbr.rel (%p528) target = $region44
      $region43: #{silutopsis_forward.3} parent=39 // pred_region
        %s531 = smul.u32 8, %s15
        %p532 = scmp.lt.s32.totalorder %s531, 15
        %s533 = scalar_select %p532, %s531, 15
        %s534 = smul.addr %s533, 2
        %s535 = smul.addr %s534, 8
        %s536 = scalar_lea.vmem %s3, %s535
      $region44: #{silutopsis_forward.3} parent=39 // pred_fallthru
        _
    $region40: #{silutopsis_forward.3} parent=5 // pred_fallthru
      _
  $region6: #{silutopsis_forward.3} parent=0 // loop_footer
    %s13 = sadd.s32 1, %s9
  $region7: #{silutopsis_forward.3} parent=0 // loop_footer_branch
    %8 = sbr.rel target = $region3
  $region8: #{silutopsis_forward.3} parent=0 // loop_exit
    _

// kernel: silutopsis_forward.2
$region0: #{silutopsis_forward.2}
  #allocation0 [shape = 'u32[]', space=smem, size = 0x4, offset = 0x4, fixed_abs, tag = 'smem constant byte address 0x4 - core index']
  #allocation1 [shape = 'u32[144,128]{1,0:T(1,128)}', space=vmem, size = 0x12000, scoped, tag = 'internal scratch']
  %s0 = inlined_call_operand.vmem [shape: f32[2,49,64], index: 0, kind: input, shape index: {}]
  %s1 = inlined_call_operand.vmem [shape: f32[8,64], index: 1, kind: input, shape index: {}]
  %s2 = inlined_call_operand.vmem [shape: f32[64,64], index: 2, kind: input, shape index: {}]
  %s3 = inlined_call_operand.vmem [shape: f32[2,49,64], index: 3, kind: output, shape index: {}]
  %s4 = sld [smem:[#allocation0]]
  $region45: #{silutopsis_forward.2} parent=0
    _
  %s6 = ssub.s32 1, %s4
  %s7 = scalar_select 0, %s6, %s4
  loop: start=0, step=1, limit=4
  $region2: #{silutopsis_forward.2} parent=0 // loop_pre_header
    _
  $region3: #{silutopsis_forward.2} parent=0 // loop_header
    %s9 = sphi 0, %s13
    %p10 = scmp.ge.s32.totalorder %s9, 4
    %s19 = sphi 0, %s21
    %s22 = sphi 0, %s19
    %s23 = sphi 0, %s22
    %s39 = sphi 0, %s23
    %s43 = sphi 0, %s43
    %s45 = sphi 0, %s43
    %s46 = sphi 0, %s45
    %s60 = sphi 0, %s46
    %s64 = sphi 0, %s64
    %s66 = sphi 0, %s64
    %s67 = sphi 0, %s66
    %s81 = sphi 0, %s67
    %s87 = sphi 0, %s89
    %s90 = sphi 0, %s87
    %s91 = sphi 0, %s90
    %s107 = sphi 0, %s91
  $region4: #{silutopsis_forward.2} parent=0 // loop_header_branch
    %12 = sbr.rel (%p10) target = $region8
  $region5: #{silutopsis_forward.2} parent=0 // loop_body
    %s14 = ssub.s32 %s9, 1
    %s15 = ssub.s32 %s9, 2
    %s16 = sadd.s32 %s9, 1
    %s17 = ssub.s32 %s9, %s16
    %p18 = scmp.eq.s32.totalorder %s17, 0
    %s20 = sadd.s32 %s19, 1
    %s21 = scalar_select %p18, %s19, %s20
    %p24 = pneg %p18
    %p25 = scmp.eq.s32.totalorder %s9, 1
    %p26 = por %p24, %p25
    %p27 = scmp.ne.s32.totalorder %s19, %s22
    %p28 = scmp.eq.s32.totalorder %s9, 0
    %p29 = por %p27, %p28
    %p30 = scmp.ne.s32.totalorder %s19, %s22
    %p31 = scmp.eq.s32.totalorder %s14, 1
    %p32 = por %p30, %p31
    %p33 = scmp.ne.s32.totalorder %s22, %s23
    %p34 = scmp.eq.s32.totalorder %s14, 0
    %p35 = por %p33, %p34
    %p36 = scmp.ne.s32.totalorder %s22, %s23
    %p37 = scmp.eq.s32.totalorder %s15, 1
    %p38 = por %p36, %p37
    %p40 = scmp.ne.s32.totalorder %s23, %s39
    %p41 = scmp.eq.s32.totalorder %s15, 0
    %p42 = por %p40, %p41
    %s44 = sadd.s32 %s43, 1
    %p47 = scmp.eq.s32.totalorder %s9, 1
    %p48 = scmp.ne.s32.totalorder %s43, %s45
    %p49 = scmp.eq.s32.totalorder %s9, 0
    %p50 = por %p48, %p49
    %p51 = scmp.ne.s32.totalorder %s43, %s45
    %p52 = scmp.eq.s32.totalorder %s14, 1
    %p53 = por %p51, %p52
    %p54 = scmp.ne.s32.totalorder %s45, %s46
    %p55 = scmp.eq.s32.totalorder %s14, 0
    %p56 = por %p54, %p55
    %p57 = scmp.ne.s32.totalorder %s45, %s46
    %p58 = scmp.eq.s32.totalorder %s15, 1
    %p59 = por %p57, %p58
    %p61 = scmp.ne.s32.totalorder %s46, %s60
    %p62 = scmp.eq.s32.totalorder %s15, 0
    %p63 = por %p61, %p62
    %s65 = sadd.s32 %s64, 1
    %p68 = scmp.eq.s32.totalorder %s9, 1
    %p69 = scmp.ne.s32.totalorder %s64, %s66
    %p70 = scmp.eq.s32.totalorder %s9, 0
    %p71 = por %p69, %p70
    %p72 = scmp.ne.s32.totalorder %s64, %s66
    %p73 = scmp.eq.s32.totalorder %s14, 1
    %p74 = por %p72, %p73
    %p75 = scmp.ne.s32.totalorder %s66, %s67
    %p76 = scmp.eq.s32.totalorder %s14, 0
    %p77 = por %p75, %p76
    %p78 = scmp.ne.s32.totalorder %s66, %s67
    %p79 = scmp.eq.s32.totalorder %s15, 1
    %p80 = por %p78, %p79
    %p82 = scmp.ne.s32.totalorder %s67, %s81
    %p83 = scmp.eq.s32.totalorder %s15, 0
    %p84 = por %p82, %p83
    %s85 = ssub.s32 %s9, %s16
    %p86 = scmp.eq.s32.totalorder %s85, 0
    %s88 = sadd.s32 %s87, 1
    %s89 = scalar_select %p86, %s87, %s88
    %p92 = pneg %p86
    %p93 = scmp.eq.s32.totalorder %s9, 1
    %p94 = por %p92, %p93
    %p95 = scmp.ne.s32.totalorder %s87, %s90
    %p96 = scmp.eq.s32.totalorder %s9, 0
    %p97 = por %p95, %p96
    %p98 = scmp.ne.s32.totalorder %s87, %s90
    %p99 = scmp.eq.s32.totalorder %s14, 1
    %p100 = por %p98, %p99
    %p101 = scmp.ne.s32.totalorder %s90, %s91
    %p102 = scmp.eq.s32.totalorder %s14, 0
    %p103 = por %p101, %p102
    %p104 = scmp.ne.s32.totalorder %s90, %s91
    %p105 = scmp.eq.s32.totalorder %s15, 1
    %p106 = por %p104, %p105
    %p108 = scmp.ne.s32.totalorder %s91, %s107
    %p109 = scmp.eq.s32.totalorder %s15, 0
    %p110 = por %p108, %p109
    %p111 = scmp.le.s32.totalorder 1, %s9
    %p112 = scmp.lt.s32.totalorder %s9, 3
    %p113 = pnand %p111, %p112
    %p114 = pneg %p113
    // Predicated region
    $region9: #{silutopsis_forward.2} parent=5 // pred_check
      _
    $region10: #{silutopsis_forward.2} parent=5 // pred_check_branch
      %116 = sbr.rel (%p113) target = $region12
    $region11: #{silutopsis_forward.2} parent=5 // pred_region
      %s117 = ssub.s32 %s9, 1
      // Predicated region
      $region13: #{silutopsis_forward.2} parent=11 // pred_check
        %p118 = pneg %p56
      $region14: #{silutopsis_forward.2} parent=11 // pred_check_branch
        %120 = sbr.rel (%p118) target = $region16
      $region15: #{silutopsis_forward.2} parent=11 // pred_region
        _
      $region16: #{silutopsis_forward.2} parent=11 // pred_fallthru
        _
      // Predicated region
      $region17: #{silutopsis_forward.2} parent=11 // pred_check
        %p121 = pneg %p77
      $region18: #{silutopsis_forward.2} parent=11 // pred_check_branch
        %123 = sbr.rel (%p121) target = $region20
      $region19: #{silutopsis_forward.2} parent=11 // pred_region
        _
      $region20: #{silutopsis_forward.2} parent=11 // pred_fallthru
        _
    $region12: #{silutopsis_forward.2} parent=5 // pred_fallthru
      _
    %p124 = scmp.lt.s32.totalorder %s9, 2
    // Predicated region
    $region21: #{silutopsis_forward.2} parent=5 // pred_check
      %p125 = pneg %p124
    $region22: #{silutopsis_forward.2} parent=5 // pred_check_branch
      %127 = sbr.rel (%p125) target = $region24
    $region23: #{silutopsis_forward.2} parent=5 // pred_region
      // Predicated region
      $region25: #{silutopsis_forward.2} parent=23 // pred_check
        %p128 = pneg %p29
      $region26: #{silutopsis_forward.2} parent=23 // pred_check_branch
        %130 = sbr.rel (%p128) target = $region28
      $region27: #{silutopsis_forward.2} parent=23 // pred_region
        %p131 = scmp.lt.s32.totalorder %s9, 1
        %s132 = scalar_select %p131, %s9, 1
        %s133 = smul.addr %s132, 7
        %s134 = smul.addr %s133, 8
        %s135 = scalar_lea.vmem %s0, %s134
      $region28: #{silutopsis_forward.2} parent=23 // pred_fallthru
        _
    $region24: #{silutopsis_forward.2} parent=5 // pred_fallthru
      _
    %p136 = scmp.le.s32.totalorder 1, %s9
    %p137 = scmp.lt.s32.totalorder %s9, 3
    %p138 = pnand %p136, %p137
    %p139 = pneg %p138
    // Predicated region
    $region29: #{silutopsis_forward.2} parent=5 // pred_check
      _
    $region30: #{silutopsis_forward.2} parent=5 // pred_check_branch
      %141 = sbr.rel (%p138) target = $region32
    $region31: #{silutopsis_forward.2} parent=5 // pred_region
      %s142 = ssub.s32 %s9, 1
      %p143 = scmp.lt.s32.totalorder %s14, 1
      %s144 = scalar_select %p143, %s14, 1
      %s145 = smul.addr %s144, 7
      %s146 = smul.addr %s145, 8
      %s147 = scalar_lea.vmem %s0, %s146
      %p148 = pneg %p35
      %p149 = pneg %p32
      %p150 = pneg %p56
      %p151 = pneg %p53
      %p152 = pneg %p77
      %p153 = pneg %p74
      %p154 = pneg %p103
      %p155 = pneg %p100
      %p156 = scmp.lt.s32.totalorder %s14, 1
      %s157 = scalar_select %p156, %s14, 1
      %s158 = smul.addr %s157, 7
      %s159 = smul.addr %s158, 8
      %s160 = scalar_lea.vmem %s3, %s159
      %p161 = scmp.lt.s32.totalorder %s14, 1
      %s162 = scalar_select %p161, %s14, 1
      %s163 = smul.addr %s162, 7
      %s164 = smul.addr %s163, 8
      %s165 = scalar_lea.vmem %s0, %s164
      %p166 = scmp.lt.s32.totalorder %s14, 1
      %s167 = scalar_select %p166, %s14, 1
      %s168 = smul.addr %s167, 7
      %s169 = smul.addr %s168, 8
      %s170 = scalar_lea.vmem %s3, %s169
      %v171 = vld [vmem:[%s165] sm:$0xff]
      %v172 = vld [vmem:[%s165 + $0x8] sm:$0xff]
      %v173 = vld [vmem:[%s165 + $0x10] sm:$0xff]
      %v174 = vld [vmem:[%s165 + $0x18] sm:$0xff]
      %v175 = vld [vmem:[%s165 + $0x20] sm:$0xff]
      %v176 = vld [vmem:[%s165 + $0x28] sm:$0xff]
      %v177 = vld [vmem:[%s165 + $0x30] sm:$0x1]
      %v178 = vld [vmem:[%s1] sm:$0xff]
      %vm179 = vcmask 523264
      %v180 = vsel %vm179, %v171, 0.0
      %181 = vadd.xlane.f32.xlu0 %v180
      %v182 = vpop.xlane.xlu0 %181
      %v183 = vsel %vm179, %v172, 0.0
      %184 = vadd.xlane.f32.xlu0 %v183
      %v185 = vpop.xlane.xlu0 %184
      %v186 = vsel %vm179, %v173, 0.0
      %187 = vadd.xlane.f32.xlu0 %v186
      %v188 = vpop.xlane.xlu0 %187
      %v189 = vsel %vm179, %v174, 0.0
      %190 = vadd.xlane.f32.xlu0 %v189
      %v191 = vpop.xlane.xlu0 %190
      %v192 = vsel %vm179, %v175, 0.0
      %193 = vadd.xlane.f32.xlu0 %v192
      %v194 = vpop.xlane.xlu0 %193
      %v195 = vsel %vm179, %v176, 0.0
      %196 = vadd.xlane.f32.xlu0 %v195
      %v197 = vpop.xlane.xlu0 %196
      %vm198 = vcmask 516096
      %v199 = vsel %vm198, %v177, 0.0
      %200 = vadd.xlane.f32.xlu0 %v199
      %v201 = vpop.xlane.xlu0 %200
      %v202 = vrcp.pop 64.0
      %v203 = vmul.f32 %v182, %v202
      %v204 = vmul.f32 %v185, %v202
      %v205 = vmul.f32 %v188, %v202
      %v206 = vmul.f32 %v191, %v202
      %v207 = vmul.f32 %v194, %v202
      %v208 = vmul.f32 %v197, %v202
      %v209 = vmul.f32 %v201, %v202
      %v210 = vsub.f32 %v171, %v203
      %v211 = vsub.f32 %v172, %v204
      %v212 = vsub.f32 %v173, %v205
      %v213 = vsub.f32 %v174, %v206
      %v214 = vsub.f32 %v175, %v207
      %v215 = vsub.f32 %v176, %v208
      %v216 = vsub.f32 %v177, %v209
      %v217 = vmul.f32 %v210, %v210
      %v218 = vmul.f32 %v211, %v211
      %v219 = vmul.f32 %v212, %v212
      %v220 = vmul.f32 %v213, %v213
      %v221 = vmul.f32 %v214, %v214
      %v222 = vmul.f32 %v215, %v215
      %v223 = vmul.f32 %v216, %v216
      %v224 = vsel %vm179, %v217, 0.0
      %225 = vadd.xlane.f32.xlu0 %v224
      %v226 = vpop.xlane.xlu0 %225
      %v227 = vsel %vm179, %v218, 0.0
      %228 = vadd.xlane.f32.xlu0 %v227
      %v229 = vpop.xlane.xlu0 %228
      %v230 = vsel %vm179, %v219, 0.0
      %231 = vadd.xlane.f32.xlu0 %v230
      %v232 = vpop.xlane.xlu0 %231
      %v233 = vsel %vm179, %v220, 0.0
      %234 = vadd.xlane.f32.xlu0 %v233
      %v235 = vpop.xlane.xlu0 %234
      %v236 = vsel %vm179, %v221, 0.0
      %237 = vadd.xlane.f32.xlu0 %v236
      %v238 = vpop.xlane.xlu0 %237
      %v239 = vsel %vm179, %v222, 0.0
      %240 = vadd.xlane.f32.xlu0 %v239
      %v241 = vpop.xlane.xlu0 %240
      %v242 = vsel %vm198, %v223, 0.0
      %243 = vadd.xlane.f32.xlu0 %v242
      %v244 = vpop.xlane.xlu0 %243
      %v245 = vmul.f32 %v226, %v202
      %v246 = vmul.f32 %v229, %v202
      %v247 = vmul.f32 %v232, %v202
      %v248 = vmul.f32 %v235, %v202
      %v249 = vmul.f32 %v238, %v202
      %v250 = vmul.f32 %v241, %v202
      %v251 = vmul.f32 %v244, %v202
      %v252 = vadd.f32 %v245, 1e-06
      %v253 = vadd.f32 %v246, 1e-06
      %v254 = vadd.f32 %v247, 1e-06
      %v255 = vadd.f32 %v248, 1e-06
      %v256 = vadd.f32 %v249, 1e-06
      %v257 = vadd.f32 %v250, 1e-06
      %v258 = vadd.f32 %v251, 1e-06
      %v259 = vrsqrt.pop %v252
      %v260 = vrsqrt.pop %v253
      %v261 = vrsqrt.pop %v254
      %v262 = vrsqrt.pop %v255
      %v263 = vrsqrt.pop %v256
      %v264 = vrsqrt.pop %v257
      %v265 = vrsqrt.pop %v258
      %v266 = vmul.f32 %v210, %v259
      %v267 = vmul.f32 %v211, %v260
      %v268 = vmul.f32 %v212, %v261
      %v269 = vmul.f32 %v213, %v262
      %v270 = vmul.f32 %v214, %v263
      %v271 = vmul.f32 %v215, %v264
      %v272 = vmul.f32 %v216, %v265
      %v273 = vlaneseq
      %v274 = vshrl.u32 %v273, 7
      %v275 = vsub.s32 0, %v274
      %v276 = vrot.slane %v178, %v275
      %v277 = vmul.f32 %v266, %v276
      %v278 = vmul.f32 %v267, %v276
      %v279 = vmul.f32 %v268, %v276
      %v280 = vmul.f32 %v269, %v276
      %v281 = vmul.f32 %v270, %v276
      %v282 = vmul.f32 %v271, %v276
      %v283 = vmul.f32 %v272, %v276
      %v284 = vlaneseq
      %v285 = vshrl.u32 %v284, 7
      %v286 = vsub.s32 1, %v285
      %v287 = vrot.slane %v178, %v286
      %v288 = vadd.f32 %v277, %v287
      %v289 = vadd.f32 %v278, %v287
      %v290 = vadd.f32 %v279, %v287
      %v291 = vadd.f32 %v280, %v287
      %v292 = vadd.f32 %v281, %v287
      %v293 = vadd.f32 %v282, %v287
      %v294 = vadd.f32 %v283, %v287
      %v295 = vlaneseq
      %v296 = vshrl.u32 %v295, 7
      %v297 = vsub.s32 2, %v296
      %v298 = vrot.slane %v178, %v297
      %v299 = vmul.f32 %v266, %v298
      %v300 = vmul.f32 %v267, %v298
      %v301 = vmul.f32 %v268, %v298
      %v302 = vmul.f32 %v269, %v298
      %v303 = vmul.f32 %v270, %v298
      %v304 = vmul.f32 %v271, %v298
      %v305 = vmul.f32 %v272, %v298
      %v306 = vlaneseq
      %v307 = vshrl.u32 %v306, 7
      %v308 = vsub.s32 3, %v307
      %v309 = vrot.slane %v178, %v308
      %v310 = vadd.f32 %v299, %v309
      %v311 = vadd.f32 %v300, %v309
      %v312 = vadd.f32 %v301, %v309
      %v313 = vadd.f32 %v302, %v309
      %v314 = vadd.f32 %v303, %v309
      %v315 = vadd.f32 %v304, %v309
      %v316 = vadd.f32 %v305, %v309
      %v317 = vlaneseq
      %v318 = vshrl.u32 %v317, 7
      %v319 = vsub.s32 4, %v318
      %v320 = vrot.slane %v178, %v319
      %v321 = vmul.f32 %v266, %v320
      %v322 = vmul.f32 %v267, %v320
      %v323 = vmul.f32 %v268, %v320
      %v324 = vmul.f32 %v269, %v320
      %v325 = vmul.f32 %v270, %v320
      %v326 = vmul.f32 %v271, %v320
      %v327 = vmul.f32 %v272, %v320
      %v328 = vlaneseq
      %v329 = vshrl.u32 %v328, 7
      %v330 = vsub.s32 5, %v329
      %v331 = vrot.slane %v178, %v330
      %v332 = vadd.f32 %v321, %v331
      %v333 = vadd.f32 %v322, %v331
      %v334 = vadd.f32 %v323, %v331
      %v335 = vadd.f32 %v324, %v331
      %v336 = vadd.f32 %v325, %v331
      %v337 = vadd.f32 %v326, %v331
      %v338 = vadd.f32 %v327, %v331
      %vm339 = vcmask 261120
      %v341 = vsel %vm339, %v288, 0
      %v344 = vsel %vm339, %v289, 0
      %v347 = vsel %vm339, %v290, 0
      %v350 = vsel %vm339, %v291, 0
      %v353 = vsel %vm339, %v292, 0
      %v356 = vsel %vm339, %v293, 0
      %v359 = vsel %vm339, %v294, 0
      %v362 = vsel %vm339, %v310, 0
      %v365 = vsel %vm339, %v311, 0
      %v368 = vsel %vm339, %v312, 0
      %v371 = vsel %vm339, %v313, 0
      %v374 = vsel %vm339, %v314, 0
      %v377 = vsel %vm339, %v315, 0
      %v380 = vsel %vm339, %v316, 0
      %382 = vmatprep.subr.mxu0 0.0
      %383 = vmatpush1.xpose.msra.mxu0 0.0
      %384 = vmatprep.subr.mxu0 0.0
      %385 = vmatpush1.xpose.msra.mxu0 0.0
      %386 = vmatprep.subr.mxu0 0.0
      %387 = vmatpush1.xpose.msra.mxu0 0.0
      %388 = vmatprep.subr.mxu0 0.0
      %389 = vmatpush1.xpose.msra.mxu0 0.0
      %390 = vmatprep.subr.mxu0 0.0
      %391 = vmatpush1.xpose.msra.mxu0 0.0
      %392 = vmatprep.subr.mxu0 0.0
      %393 = vmatpush1.xpose.msra.mxu0 0.0
      %394 = vmatprep.subr.mxu0 0.0
      %395 = vmatpush1.xpose.msra.mxu0 0.0
      %396 = vmatprep.subr.mxu0 0.0
      %397 = vmatpush1.xpose.msra.mxu0 0.0
      %398 = vmatprep.subr.mxu0 0.0
      %399 = vmatpush1.xpose.msra.mxu0 0.0
      %400 = vmatprep.subr.mxu0 0.0
      %401 = vmatpush1.xpose.msra.mxu0 %v380
      %402 = vmatprep.subr.mxu0 0.0
      %403 = vmatpush1.xpose.msra.mxu0 %v377
      %404 = vmatprep.subr.mxu0 0.0
      %405 = vmatpush1.xpose.msra.mxu0 %v374
      %406 = vmatprep.subr.mxu0 0.0
      %407 = vmatpush1.xpose.msra.mxu0 %v371
      %408 = vmatprep.subr.mxu0 0.0
      %409 = vmatpush1.xpose.msra.mxu0 %v368
      %410 = vmatprep.subr.mxu0 0.0
      %411 = vmatpush1.xpose.msra.mxu0 %v365
      %412 = vmatprep.subr.mxu0 0.0
      %413 = vmatpush1.xpose.msra.mxu0 %v362
      %414 = vmatprep.subr.mxu0 0.0
      %415 = vmatpush2.xpose.msra.mxu0 0.0
      %416 = vmatprep.subr.mxu0 0.0
      %417 = vmatpush2.xpose.msra.mxu0 0.0
      %418 = vmatprep.subr.mxu0 0.0
      %419 = vmatpush2.xpose.msra.mxu0 0.0
      %420 = vmatprep.subr.mxu0 0.0
      %421 = vmatpush2.xpose.msra.mxu0 0.0
      %422 = vmatprep.subr.mxu0 0.0
      %423 = vmatpush2.xpose.msra.mxu0 0.0
      %424 = vmatprep.subr.mxu0 0.0
      %425 = vmatpush2.xpose.msra.mxu0 0.0
      %426 = vmatprep.subr.mxu0 0.0
      %427 = vmatpush2.xpose.msra.mxu0 0.0
      %428 = vmatprep.subr.mxu0 0.0
      %429 = vmatpush2.xpose.msra.mxu0 0.0
      %430 = vmatprep.subr.mxu0 0.0
      %431 = vmatpush2.xpose.msra.mxu0 0.0
      %432 = vmatprep.subr.mxu0 0.0
      %433 = vmatpush2.xpose.msra.mxu0 0.0
      %434 = vmatprep.subr.mxu0 0.0
      %435 = vmatpush2.xpose.msra.mxu0 0.0
      %436 = vmatprep.subr.mxu0 0.0
      %437 = vmatpush2.xpose.msra.mxu0 0.0
      %438 = vmatprep.subr.mxu0 0.0
      %439 = vmatpush2.xpose.msra.mxu0 0.0
      %440 = vmatprep.subr.mxu0 0.0
      %441 = vmatpush2.xpose.msra.mxu0 0.0
      %442 = vmatprep.subr.mxu0 0.0
      %443 = vmatpush2.xpose.msra.mxu0 0.0
      %444 = vmatprep.subr.mxu0 0.0
      %445 = vmatpush2.xpose.msra.mxu0 0.0
      %446 = vmatprep.mubr.f32.mxu0 0.0
      %447 = vmatmul.mubr.f32.gmra.mxu0 %v341
      %v448 = vpop.f32.mrf.mxu0
      %v449 = vadd.f32 0.0, %v448
      %v450 = vpop.f32.mrf.mxu0
      %451 = vmatprep.mubr.f32.mxu0 0.0
      %452 = vmatmul.mubr.f32.gmra.mxu0 %v344
      %v453 = vpop.f32.mrf.mxu0
      %v454 = vadd.f32 0.0, %v453
      %v455 = vpop.f32.mrf.mxu0
      %456 = vmatprep.mubr.f32.mxu0 0.0
      %457 = vmatmul.mubr.f32.gmra.mxu0 %v347
      %v458 = vpop.f32.mrf.mxu0
      %v459 = vadd.f32 0.0, %v458
      %v460 = vpop.f32.mrf.mxu0
      %461 = vmatprep.mubr.f32.mxu0 0.0
      %462 = vmatmul.mubr.f32.gmra.mxu0 %v350
      %v463 = vpop.f32.mrf.mxu0
      %v464 = vadd.f32 0.0, %v463
      %v465 = vpop.f32.mrf.mxu0
      %466 = vmatprep.mubr.f32.mxu0 0.0
      %467 = vmatmul.mubr.f32.gmra.mxu0 %v353
      %v468 = vpop.f32.mrf.mxu0
      %v469 = vadd.f32 0.0, %v468
      %v470 = vpop.f32.mrf.mxu0
      %471 = vmatprep.mubr.f32.mxu0 0.0
      %472 = vmatmul.mubr.f32.gmra.mxu0 %v356
      %v473 = vpop.f32.mrf.mxu0
      %v474 = vadd.f32 0.0, %v473
      %v475 = vpop.f32.mrf.mxu0
      %476 = vmatprep.mubr.f32.mxu0 0.0
      %477 = vmatmul.mubr.f32.gmra.mxu0 %v359
      %v478 = vpop.f32.mrf.mxu0
      %v479 = vadd.f32 0.0, %v478
      %v480 = vpop.f32.mrf.mxu0
      %481 = vdwg.mxu0
      %v482 = vmul.f32 %v449, 0.17677669
      %v483 = vmul.f32 %v454, 0.17677669
      %v484 = vmul.f32 %v459, 0.17677669
      %v485 = vmul.f32 %v464, 0.17677669
      %v486 = vmul.f32 %v469, 0.17677669
      %v487 = vmul.f32 %v474, 0.17677669
      %v488 = vmul.f32 %v479, 0.17677669
      %vm489 = vcmask 400384
      %v490 = vsel %vm489, %v482, -inf
      %491 = vmax.xlane.f32.xlu0 %v490
      %v492 = vpop.xlane.xlu0 %491
      %v493 = vsel %vm489, %v483, -inf
      %494 = vmax.xlane.f32.xlu0 %v493
      %v495 = vpop.xlane.xlu0 %494
      %v496 = vsel %vm489, %v484, -inf
      %497 = vmax.xlane.f32.xlu0 %v496
      %v498 = vpop.xlane.xlu0 %497
      %v499 = vsel %vm489, %v485, -inf
      %500 = vmax.xlane.f32.xlu0 %v499
      %v501 = vpop.xlane.xlu0 %500
      %v502 = vsel %vm489, %v486, -inf
      %503 = vmax.xlane.f32.xlu0 %v502
      %v504 = vpop.xlane.xlu0 %503
      %v505 = vsel %vm489, %v487, -inf
      %506 = vmax.xlane.f32.xlu0 %v505
      %v507 = vpop.xlane.xlu0 %506
      %vm508 = vcmask 393216
      %v509 = vsel %vm508, %v488, -inf
      %510 = vmax.xlane.f32.xlu0 %v509
      %v511 = vpop.xlane.xlu0 %510
      %v512 = vsub.f32 %v482, %v492
      %v513 = vsub.f32 %v483, %v495
      %v514 = vsub.f32 %v484, %v498
      %v515 = vsub.f32 %v485, %v501
      %v516 = vsub.f32 %v486, %v504
      %v517 = vsub.f32 %v487, %v507
      %v518 = vsub.f32 %v488, %v511
      %v519 = vmul.f32 %v512, 1.442695
      %v520 = vpow.pop %v519
      %v521 = vmul.f32 %v513, 1.442695
      %v522 = vpow.pop %v521
      %v523 = vmul.f32 %v514, 1.442695
      %v524 = vpow.pop %v523
      %v525 = vmul.f32 %v515, 1.442695
      %v526 = vpow.pop %v525
      %v527 = vmul.f32 %v516, 1.442695
      %v528 = vpow.pop %v527
      %v529 = vmul.f32 %v517, 1.442695
      %v530 = vpow.pop %v529
      %v531 = vmul.f32 %v518, 1.442695
      %v532 = vpow.pop %v531
      %v533 = vsel %vm489, %v520, 0.0
      %534 = vadd.xlane.f32.xlu0 %v533
      %v535 = vpop.xlane.xlu0 %534
      %v536 = vsel %vm489, %v522, 0.0
      %537 = vadd.xlane.f32.xlu0 %v536
      %v538 = vpop.xlane.xlu0 %537
      %v539 = vsel %vm489, %v524, 0.0
      %540 = vadd.xlane.f32.xlu0 %v539
      %v541 = vpop.xlane.xlu0 %540
      %v542 = vsel %vm489, %v526, 0.0
      %543 = vadd.xlane.f32.xlu0 %v542
      %v544 = vpop.xlane.xlu0 %543
      %v545 = vsel %vm489, %v528, 0.0
      %546 = vadd.xlane.f32.xlu0 %v545
      %v547 = vpop.xlane.xlu0 %546
      %v548 = vsel %vm489, %v530, 0.0
      %549 = vadd.xlane.f32.xlu0 %v548
      %v550 = vpop.xlane.xlu0 %549
      %v551 = vsel %vm508, %v532, 0.0
      %552 = vadd.xlane.f32.xlu0 %v551
      %v553 = vpop.xlane.xlu0 %552
      %v554 = vrcp.pop %v535
      %v555 = vrcp.pop %v538
      %v556 = vrcp.pop %v541
      %v557 = vrcp.pop %v544
      %v558 = vrcp.pop %v547
      %v559 = vrcp.pop %v550
      %v560 = vrcp.pop %v553
      %v561 = vmul.f32 %v520, %v554
      %v562 = vmul.f32 %v522, %v555
      %v563 = vmul.f32 %v524, %v556
      %v564 = vmul.f32 %v526, %v557
      %v565 = vmul.f32 %v528, %v558
      %v566 = vmul.f32 %v530, %v559
      %v567 = vmul.f32 %v532, %v560
      %v569 = vsel %vm489, %v561, 0
      %v572 = vsel %vm489, %v562, 0
      %v575 = vsel %vm489, %v563, 0
      %v578 = vsel %vm489, %v564, 0
      %v581 = vsel %vm489, %v565, 0
      %v584 = vsel %vm489, %v566, 0
      %v587 = vsel %vm489, %v567, 0
      %vm589 = vcmask 1040384
      %v591 = vsel %vm589, %v338, 0
      %593 = vmatprep.subr.mxu0 0.0
      %594 = vmatpush1.msra.mxu0 0.0
      %595 = vmatprep.subr.mxu0 0.0
      %596 = vmatpush1.msra.mxu0 0.0
      %597 = vmatprep.subr.mxu0 0.0
      %598 = vmatpush1.msra.mxu0 0.0
      %599 = vmatprep.subr.mxu0 0.0
      %600 = vmatpush1.msra.mxu0 0.0
      %601 = vmatprep.subr.mxu0 0.0
      %602 = vmatpush1.msra.mxu0 0.0
      %603 = vmatprep.subr.mxu0 0.0
      %604 = vmatpush1.msra.mxu0 0.0
      %605 = vmatprep.subr.mxu0 0.0
      %606 = vmatpush1.msra.mxu0 0.0
      %607 = vmatprep.subr.mxu0 0.0
      %608 = vmatpush1.msra.mxu0 0.0
      %609 = vmatprep.subr.mxu0 0.0
      %610 = vmatpush1.msra.mxu0 0.0
      %611 = vmatprep.subr.mxu0 0.0
      %612 = vmatpush1.msra.mxu0 %v591
      %613 = vmatprep.subr.mxu0 0.0
      %614 = vmatpush1.msra.mxu0 %v337
      %615 = vmatprep.subr.mxu0 0.0
      %616 = vmatpush1.msra.mxu0 %v336
      %617 = vmatprep.subr.mxu0 0.0
      %618 = vmatpush1.msra.mxu0 %v335
      %619 = vmatprep.subr.mxu0 0.0
      %620 = vmatpush1.msra.mxu0 %v334
      %621 = vmatprep.subr.mxu0 0.0
      %622 = vmatpush1.msra.mxu0 %v333
      %623 = vmatprep.subr.mxu0 0.0
      %624 = vmatpush1.msra.mxu0 %v332
      %625 = vmatprep.subr.mxu0 0.0
      %626 = vmatpush2.msra.mxu0 0.0
      %627 = vmatprep.subr.mxu0 0.0
      %628 = vmatpush2.msra.mxu0 0.0
      %629 = vmatprep.subr.mxu0 0.0
      %630 = vmatpush2.msra.mxu0 0.0
      %631 = vmatprep.subr.mxu0 0.0
      %632 = vmatpush2.msra.mxu0 0.0
      %633 = vmatprep.subr.mxu0 0.0
      %634 = vmatpush2.msra.mxu0 0.0
      %635 = vmatprep.subr.mxu0 0.0
      %636 = vmatpush2.msra.mxu0 0.0
      %637 = vmatprep.subr.mxu0 0.0
      %638 = vmatpush2.msra.mxu0 0.0
      %639 = vmatprep.subr.mxu0 0.0
      %640 = vmatpush2.msra.mxu0 0.0
      %641 = vmatprep.subr.mxu0 0.0
      %642 = vmatpush2.msra.mxu0 0.0
      %643 = vmatprep.subr.mxu0 0.0
      %644 = vmatpush2.msra.mxu0 0.0
      %645 = vmatprep.subr.mxu0 0.0
      %646 = vmatpush2.msra.mxu0 0.0
      %647 = vmatprep.subr.mxu0 0.0
      %648 = vmatpush2.msra.mxu0 0.0
      %649 = vmatprep.subr.mxu0 0.0
      %650 = vmatpush2.msra.mxu0 0.0
      %651 = vmatprep.subr.mxu0 0.0
      %652 = vmatpush2.msra.mxu0 0.0
      %653 = vmatprep.subr.mxu0 0.0
      %654 = vmatpush2.msra.mxu0 0.0
      %655 = vmatprep.subr.mxu0 0.0
      %656 = vmatpush2.msra.mxu0 0.0
      %657 = vmatprep.mubr.f32.mxu0 0.0
      %658 = vmatmul.mubr.f32.gmra.mxu0 %v569
      %v659 = vpop.f32.mrf.mxu0
      %v660 = vadd.f32 0.0, %v659
      %v661 = vpop.f32.mrf.mxu0
      %662 = vmatprep.mubr.f32.mxu0 0.0
      %663 = vmatmul.mubr.f32.gmra.mxu0 %v572
      %v664 = vpop.f32.mrf.mxu0
      %v665 = vadd.f32 0.0, %v664
      %v666 = vpop.f32.mrf.mxu0
      %667 = vmatprep.mubr.f32.mxu0 0.0
      %668 = vmatmul.mubr.f32.gmra.mxu0 %v575
      %v669 = vpop.f32.mrf.mxu0
      %v670 = vadd.f32 0.0, %v669
      %v671 = vpop.f32.mrf.mxu0
      %672 = vmatprep.mubr.f32.mxu0 0.0
      %673 = vmatmul.mubr.f32.gmra.mxu0 %v578
      %v674 = vpop.f32.mrf.mxu0
      %v675 = vadd.f32 0.0, %v674
      %v676 = vpop.f32.mrf.mxu0
      %677 = vmatprep.mubr.f32.mxu0 0.0
      %678 = vmatmul.mubr.f32.gmra.mxu0 %v581
      %v679 = vpop.f32.mrf.mxu0
      %v680 = vadd.f32 0.0, %v679
      %v681 = vpop.f32.mrf.mxu0
      %682 = vmatprep.mubr.f32.mxu0 0.0
      %683 = vmatmul.mubr.f32.gmra.mxu0 %v584
      %v684 = vpop.f32.mrf.mxu0
      %v685 = vadd.f32 0.0, %v684
      %v686 = vpop.f32.mrf.mxu0
      %687 = vmatprep.mubr.f32.mxu0 0.0
      %688 = vmatmul.mubr.f32.gmra.mxu0 %v587
      %v689 = vpop.f32.mrf.mxu0
      %v690 = vadd.f32 0.0, %v689
      %v691 = vpop.f32.mrf.mxu0
      %692 = vdwg.mxu0
      %693 = vrot.lane.b32.xlu0 %v288, 96
      %v694 = vpop.permute.xlu0 %693
      %695 = vrot.lane.b32.xlu0 %v289, 96
      %v696 = vpop.permute.xlu0 %695
      %697 = vrot.lane.b32.xlu0 %v290, 96
      %v698 = vpop.permute.xlu0 %697
      %699 = vrot.lane.b32.xlu0 %v291, 96
      %v700 = vpop.permute.xlu0 %699
      %701 = vrot.lane.b32.xlu0 %v292, 96
      %v702 = vpop.permute.xlu0 %701
      %703 = vrot.lane.b32.xlu0 %v293, 96
      %v704 = vpop.permute.xlu0 %703
      %705 = vrot.lane.b32.xlu0 %v294, 96
      %v706 = vpop.permute.xlu0 %705
      %707 = vrot.lane.b32.xlu0 %v310, 96
      %v708 = vpop.permute.xlu0 %707
      %709 = vrot.lane.b32.xlu0 %v311, 96
      %v710 = vpop.permute.xlu0 %709
      %711 = vrot.lane.b32.xlu0 %v312, 96
      %v712 = vpop.permute.xlu0 %711
      %713 = vrot.lane.b32.xlu0 %v313, 96
      %v714 = vpop.permute.xlu0 %713
      %715 = vrot.lane.b32.xlu0 %v314, 96
      %v716 = vpop.permute.xlu0 %715
      %717 = vrot.lane.b32.xlu0 %v315, 96
      %v718 = vpop.permute.xlu0 %717
      %719 = vrot.lane.b32.xlu0 %v316, 96
      %v720 = vpop.permute.xlu0 %719
      %v721 = vsel %vm339, %v694, 0
      %v723 = vsel %vm339, %v696, 0
      %v725 = vsel %vm339, %v698, 0
      %v727 = vsel %vm339, %v700, 0
      %v729 = vsel %vm339, %v702, 0
      %v731 = vsel %vm339, %v704, 0
      %v733 = vsel %vm339, %v706, 0
      %v735 = vsel %vm339, %v708, 0
      %v737 = vsel %vm339, %v710, 0
      %v739 = vsel %vm339, %v712, 0
      %v741 = vsel %vm339, %v714, 0
      %v743 = vsel %vm339, %v716, 0
      %v745 = vsel %vm339, %v718, 0
      %v747 = vsel %vm339, %v720, 0
      %749 = vmatprep.subr.mxu0 0.0
      %750 = vmatpush1.xpose.msra.mxu0 0.0
      %751 = vmatprep.subr.mxu0 0.0
      %752 = vmatpush1.xpose.msra.mxu0 0.0
      %753 = vmatprep.subr.mxu0 0.0
      %754 = vmatpush1.xpose.msra.mxu0 0.0
      %755 = vmatprep.subr.mxu0 0.0
      %756 = vmatpush1.xpose.msra.mxu0 0.0
      %757 = vmatprep.subr.mxu0 0.0
      %758 = vmatpush1.xpose.msra.mxu0 0.0
      %759 = vmatprep.subr.mxu0 0.0
      %760 = vmatpush1.xpose.msra.mxu0 0.0
      %761 = vmatprep.subr.mxu0 0.0
      %762 = vmatpush1.xpose.msra.mxu0 0.0
      %763 = vmatprep.subr.mxu0 0.0
      %764 = vmatpush1.xpose.msra.mxu0 0.0
      %765 = vmatprep.subr.mxu0 0.0
      %766 = vmatpush1.xpose.msra.mxu0 0.0
      %767 = vmatprep.subr.mxu0 0.0
      %768 = vmatpush1.xpose.msra.mxu0 %v747
      %769 = vmatprep.subr.mxu0 0.0
      %770 = vmatpush1.xpose.msra.mxu0 %v745
      %771 = vmatprep.subr.mxu0 0.0
      %772 = vmatpush1.xpose.msra.mxu0 %v743
      %773 = vmatprep.subr.mxu0 0.0
      %774 = vmatpush1.xpose.msra.mxu0 %v741
      %775 = vmatprep.subr.mxu0 0.0
      %776 = vmatpush1.xpose.msra.mxu0 %v739
      %777 = vmatprep.subr.mxu0 0.0
      %778 = vmatpush1.xpose.msra.mxu0 %v737
      %779 = vmatprep.subr.mxu0 0.0
      %780 = vmatpush1.xpose.msra.mxu0 %v735
      %781 = vmatprep.subr.mxu0 0.0
      %782 = vmatpush2.xpose.msra.mxu0 0.0
      %783 = vmatprep.subr.mxu0 0.0
      %784 = vmatpush2.xpose.msra.mxu0 0.0
      %785 = vmatprep.subr.mxu0 0.0
      %786 = vmatpush2.xpose.msra.mxu0 0.0
      %787 = vmatprep.subr.mxu0 0.0
      %788 = vmatpush2.xpose.msra.mxu0 0.0
      %789 = vmatprep.subr.mxu0 0.0
      %790 = vmatpush2.xpose.msra.mxu0 0.0
      %791 = vmatprep.subr.mxu0 0.0
      %792 = vmatpush2.xpose.msra.mxu0 0.0
      %793 = vmatprep.subr.mxu0 0.0
      %794 = vmatpush2.xpose.msra.mxu0 0.0
      %795 = vmatprep.subr.mxu0 0.0
      %796 = vmatpush2.xpose.msra.mxu0 0.0
      %797 = vmatprep.subr.mxu0 0.0
      %798 = vmatpush2.xpose.msra.mxu0 0.0
      %799 = vmatprep.subr.mxu0 0.0
      %800 = vmatpush2.xpose.msra.mxu0 0.0
      %801 = vmatprep.subr.mxu0 0.0
      %802 = vmatpush2.xpose.msra.mxu0 0.0
      %803 = vmatprep.subr.mxu0 0.0
      %804 = vmatpush2.xpose.msra.mxu0 0.0
      %805 = vmatprep.subr.mxu0 0.0
      %806 = vmatpush2.xpose.msra.mxu0 0.0
      %807 = vmatprep.subr.mxu0 0.0
      %808 = vmatpush2.xpose.msra.mxu0 0.0
      %809 = vmatprep.subr.mxu0 0.0
      %810 = vmatpush2.xpose.msra.mxu0 0.0
      %811 = vmatprep.subr.mxu0 0.0
      %812 = vmatpush2.xpose.msra.mxu0 0.0
      %813 = vmatprep.mubr.f32.mxu0 0.0
      %814 = vmatmul.mubr.f32.gmra.mxu0 %v721
      %v815 = vpop.f32.mrf.mxu0
      %v816 = vadd.f32 0.0, %v815
      %v817 = vpop.f32.mrf.mxu0
      %818 = vmatprep.mubr.f32.mxu0 0.0
      %819 = vmatmul.mubr.f32.gmra.mxu0 %v723
      %v820 = vpop.f32.mrf.mxu0
      %v821 = vadd.f32 0.0, %v820
      %v822 = vpop.f32.mrf.mxu0
      %823 = vmatprep.mubr.f32.mxu0 0.0
      %824 = vmatmul.mubr.f32.gmra.mxu0 %v725
      %v825 = vpop.f32.mrf.mxu0
      %v826 = vadd.f32 0.0, %v825
      %v827 = vpop.f32.mrf.mxu0
      %828 = vmatprep.mubr.f32.mxu0 0.0
      %829 = vmatmul.mubr.f32.gmra.mxu0 %v727
      %v830 = vpop.f32.mrf.mxu0
      %v831 = vadd.f32 0.0, %v830
      %v832 = vpop.f32.mrf.mxu0
      %833 = vmatprep.mubr.f32.mxu0 0.0
      %834 = vmatmul.mubr.f32.gmra.mxu0 %v729
      %v835 = vpop.f32.mrf.mxu0
      %v836 = vadd.f32 0.0, %v835
      %v837 = vpop.f32.mrf.mxu0
      %838 = vmatprep.mubr.f32.mxu0 0.0
      %839 = vmatmul.mubr.f32.gmra.mxu0 %v731
      %v840 = vpop.f32.mrf.mxu0
      %v841 = vadd.f32 0.0, %v840
      %v842 = vpop.f32.mrf.mxu0
      %843 = vmatprep.mubr.f32.mxu0 0.0
      %844 = vmatmul.mubr.f32.gmra.mxu0 %v733
      %v845 = vpop.f32.mrf.mxu0
      %v846 = vadd.f32 0.0, %v845
      %v847 = vpop.f32.mrf.mxu0
      %848 = vdwg.mxu0
      %v849 = vmul.f32 %v816, 0.17677669
      %v850 = vmul.f32 %v821, 0.17677669
      %v851 = vmul.f32 %v826, 0.17677669
      %v852 = vmul.f32 %v831, 0.17677669
      %v853 = vmul.f32 %v836, 0.17677669
      %v854 = vmul.f32 %v841, 0.17677669
      %v855 = vmul.f32 %v846, 0.17677669
      %v856 = vsel %vm489, %v849, -inf
      %857 = vmax.xlane.f32.xlu0 %v856
      %v858 = vpop.xlane.xlu0 %857
      %v859 = vsel %vm489, %v850, -inf
      %860 = vmax.xlane.f32.xlu0 %v859
      %v861 = vpop.xlane.xlu0 %860
      %v862 = vsel %vm489, %v851, -inf
      %863 = vmax.xlane.f32.xlu0 %v862
      %v864 = vpop.xlane.xlu0 %863
      %v865 = vsel %vm489, %v852, -inf
      %866 = vmax.xlane.f32.xlu0 %v865
      %v867 = vpop.xlane.xlu0 %866
      %v868 = vsel %vm489, %v853, -inf
      %869 = vmax.xlane.f32.xlu0 %v868
      %v870 = vpop.xlane.xlu0 %869
      %v871 = vsel %vm489, %v854, -inf
      %872 = vmax.xlane.f32.xlu0 %v871
      %v873 = vpop.xlane.xlu0 %872
      %v874 = vsel %vm508, %v855, -inf
      %875 = vmax.xlane.f32.xlu0 %v874
      %v876 = vpop.xlane.xlu0 %875
      %v877 = vsub.f32 %v849, %v858
      %v878 = vsub.f32 %v850, %v861
      %v879 = vsub.f32 %v851, %v864
      %v880 = vsub.f32 %v852, %v867
      %v881 = vsub.f32 %v853, %v870
      %v882 = vsub.f32 %v854, %v873
      %v883 = vsub.f32 %v855, %v876
      %v884 = vmul.f32 %v877, 1.442695
      %v885 = vpow.pop %v884
      %v886 = vmul.f32 %v878, 1.442695
      %v887 = vpow.pop %v886
      %v888 = vmul.f32 %v879, 1.442695
      %v889 = vpow.pop %v888
      %v890 = vmul.f32 %v880, 1.442695
      %v891 = vpow.pop %v890
      %v892 = vmul.f32 %v881, 1.442695
      %v893 = vpow.pop %v892
      %v894 = vmul.f32 %v882, 1.442695
      %v895 = vpow.pop %v894
      %v896 = vmul.f32 %v883, 1.442695
      %v897 = vpow.pop %v896
      %v898 = vsel %vm489, %v885, 0.0
      %899 = vadd.xlane.f32.xlu0 %v898
      %v900 = vpop.xlane.xlu0 %899
      %v901 = vsel %vm489, %v887, 0.0
      %902 = vadd.xlane.f32.xlu0 %v901
      %v903 = vpop.xlane.xlu0 %902
      %v904 = vsel %vm489, %v889, 0.0
      %905 = vadd.xlane.f32.xlu0 %v904
      %v906 = vpop.xlane.xlu0 %905
      %v907 = vsel %vm489, %v891, 0.0
      %908 = vadd.xlane.f32.xlu0 %v907
      %v909 = vpop.xlane.xlu0 %908
      %v910 = vsel %vm489, %v893, 0.0
      %911 = vadd.xlane.f32.xlu0 %v910
      %v912 = vpop.xlane.xlu0 %911
      %v913 = vsel %vm489, %v895, 0.0
      %914 = vadd.xlane.f32.xlu0 %v913
      %v915 = vpop.xlane.xlu0 %914
      %v916 = vsel %vm508, %v897, 0.0
      %917 = vadd.xlane.f32.xlu0 %v916
      %v918 = vpop.xlane.xlu0 %917
      %v919 = vrcp.pop %v900
      %v920 = vrcp.pop %v903
      %v921 = vrcp.pop %v906
      %v922 = vrcp.pop %v909
      %v923 = vrcp.pop %v912
      %v924 = vrcp.pop %v915
      %v925 = vrcp.pop %v918
      %v926 = vmul.f32 %v885, %v919
      %v927 = vmul.f32 %v887, %v920
      %v928 = vmul.f32 %v889, %v921
      %v929 = vmul.f32 %v891, %v922
      %v930 = vmul.f32 %v893, %v923
      %v931 = vmul.f32 %v895, %v924
      %v932 = vmul.f32 %v897, %v925
      %939 = vrot.lane.b32.xlu0 %v332, 96
      %v940 = vpop.permute.xlu0 %939
      %941 = vrot.lane.b32.xlu0 %v333, 96
      %v942 = vpop.permute.xlu0 %941
      %943 = vrot.lane.b32.xlu0 %v334, 96
      %v944 = vpop.permute.xlu0 %943
      %945 = vrot.lane.b32.xlu0 %v335, 96
      %v946 = vpop.permute.xlu0 %945
      %947 = vrot.lane.b32.xlu0 %v336, 96
      %v948 = vpop.permute.xlu0 %947
      %949 = vrot.lane.b32.xlu0 %v337, 96
      %v950 = vpop.permute.xlu0 %949
      %951 = vrot.lane.b32.xlu0 %v338, 96
      %v952 = vpop.permute.xlu0 %951
      %v960 = vsel %vm489, %v926, 0
      %v963 = vsel %vm489, %v927, 0
      %v966 = vsel %vm489, %v928, 0
      %v969 = vsel %vm489, %v929, 0
      %v972 = vsel %vm489, %v930, 0
      %v975 = vsel %vm489, %v931, 0
      %v978 = vsel %vm489, %v932, 0
      %v980 = vsel %vm589, %v952, 0
      %982 = vmatprep.subr.mxu0 0.0
      %983 = vmatpush1.msra.mxu0 0.0
      %984 = vmatprep.subr.mxu0 0.0
      %985 = vmatpush1.msra.mxu0 0.0
      %986 = vmatprep.subr.mxu0 0.0
      %987 = vmatpush1.msra.mxu0 0.0
      %988 = vmatprep.subr.mxu0 0.0
      %989 = vmatpush1.msra.mxu0 0.0
      %990 = vmatprep.subr.mxu0 0.0
      %991 = vmatpush1.msra.mxu0 0.0
      %992 = vmatprep.subr.mxu0 0.0
      %993 = vmatpush1.msra.mxu0 0.0
      %994 = vmatprep.subr.mxu0 0.0
      %995 = vmatpush1.msra.mxu0 0.0
      %996 = vmatprep.subr.mxu0 0.0
      %997 = vmatpush1.msra.mxu0 0.0
      %998 = vmatprep.subr.mxu0 0.0
      %999 = vmatpush1.msra.mxu0 0.0
      %1000 = vmatprep.subr.mxu0 0.0
      %1001 = vmatpush1.msra.mxu0 %v980
      %1002 = vmatprep.subr.mxu0 0.0
      %1003 = vmatpush1.msra.mxu0 %v950
      %1004 = vmatprep.subr.mxu0 0.0
      %1005 = vmatpush1.msra.mxu0 %v948
      %1006 = vmatprep.subr.mxu0 0.0
      %1007 = vmatpush1.msra.mxu0 %v946
      %1008 = vmatprep.subr.mxu0 0.0
      %1009 = vmatpush1.msra.mxu0 %v944
      %1010 = vmatprep.subr.mxu0 0.0
      %1011 = vmatpush1.msra.mxu0 %v942
      %1012 = vmatprep.subr.mxu0 0.0
      %1013 = vmatpush1.msra.mxu0 %v940
      %1014 = vmatprep.subr.mxu0 0.0
      %1015 = vmatpush2.msra.mxu0 0.0
      %1016 = vmatprep.subr.mxu0 0.0
      %1017 = vmatpush2.msra.mxu0 0.0
      %1018 = vmatprep.subr.mxu0 0.0
      %1019 = vmatpush2.msra.mxu0 0.0
      %1020 = vmatprep.subr.mxu0 0.0
      %1021 = vmatpush2.msra.mxu0 0.0
      %1022 = vmatprep.subr.mxu0 0.0
      %1023 = vmatpush2.msra.mxu0 0.0
      %1024 = vmatprep.subr.mxu0 0.0
      %1025 = vmatpush2.msra.mxu0 0.0
      %1026 = vmatprep.subr.mxu0 0.0
      %1027 = vmatpush2.msra.mxu0 0.0
      %1028 = vmatprep.subr.mxu0 0.0
      %1029 = vmatpush2.msra.mxu0 0.0
      %1030 = vmatprep.subr.mxu0 0.0
      %1031 = vmatpush2.msra.mxu0 0.0
      %1032 = vmatprep.subr.mxu0 0.0
      %1033 = vmatpush2.msra.mxu0 0.0
      %1034 = vmatprep.subr.mxu0 0.0
      %1035 = vmatpush2.msra.mxu0 0.0
      %1036 = vmatprep.subr.mxu0 0.0
      %1037 = vmatpush2.msra.mxu0 0.0
      %1038 = vmatprep.subr.mxu0 0.0
      %1039 = vmatpush2.msra.mxu0 0.0
      %1040 = vmatprep.subr.mxu0 0.0
      %1041 = vmatpush2.msra.mxu0 0.0
      %1042 = vmatprep.subr.mxu0 0.0
      %1043 = vmatpush2.msra.mxu0 0.0
      %1044 = vmatprep.subr.mxu0 0.0
      %1045 = vmatpush2.msra.mxu0 0.0
      %1046 = vmatprep.mubr.f32.mxu0 0.0
      %1047 = vmatmul.mubr.f32.gmra.mxu0 %v960
      %v1048 = vpop.f32.mrf.mxu0
      %v1049 = vadd.f32 0.0, %v1048
      %v1050 = vpop.f32.mrf.mxu0
      %1051 = vmatprep.mubr.f32.mxu0 0.0
      %1052 = vmatmul.mubr.f32.gmra.mxu0 %v963
      %v1053 = vpop.f32.mrf.mxu0
      %v1054 = vadd.f32 0.0, %v1053
      %v1055 = vpop.f32.mrf.mxu0
      %1056 = vmatprep.mubr.f32.mxu0 0.0
      %1057 = vmatmul.mubr.f32.gmra.mxu0 %v966
      %v1058 = vpop.f32.mrf.mxu0
      %v1059 = vadd.f32 0.0, %v1058
      %v1060 = vpop.f32.mrf.mxu0
      %1061 = vmatprep.mubr.f32.mxu0 0.0
      %1062 = vmatmul.mubr.f32.gmra.mxu0 %v969
      %v1063 = vpop.f32.mrf.mxu0
      %v1064 = vadd.f32 0.0, %v1063
      %v1065 = vpop.f32.mrf.mxu0
      %1066 = vmatprep.mubr.f32.mxu0 0.0
      %1067 = vmatmul.mubr.f32.gmra.mxu0 %v972
      %v1068 = vpop.f32.mrf.mxu0
      %v1069 = vadd.f32 0.0, %v1068
      %v1070 = vpop.f32.mrf.mxu0
      %1071 = vmatprep.mubr.f32.mxu0 0.0
      %1072 = vmatmul.mubr.f32.gmra.mxu0 %v975
      %v1073 = vpop.f32.mrf.mxu0
      %v1074 = vadd.f32 0.0, %v1073
      %v1075 = vpop.f32.mrf.mxu0
      %1076 = vmatprep.mubr.f32.mxu0 0.0
      %1077 = vmatmul.mubr.f32.gmra.mxu0 %v978
      %v1078 = vpop.f32.mrf.mxu0
      %v1079 = vadd.f32 0.0, %v1078
      %v1080 = vpop.f32.mrf.mxu0
      %1081 = vdwg.mxu0
      %1089 = vrot.lane.b32.xlu0 %v1049, 32
      %v1090 = vpop.permute.xlu0 %1089
      %1091 = vrot.lane.b32.xlu0 %v1054, 32
      %v1092 = vpop.permute.xlu0 %1091
      %1093 = vrot.lane.b32.xlu0 %v1059, 32
      %v1094 = vpop.permute.xlu0 %1093
      %1095 = vrot.lane.b32.xlu0 %v1064, 32
      %v1096 = vpop.permute.xlu0 %1095
      %1097 = vrot.lane.b32.xlu0 %v1069, 32
      %v1098 = vpop.permute.xlu0 %1097
      %1099 = vrot.lane.b32.xlu0 %v1074, 32
      %v1100 = vpop.permute.xlu0 %1099
      %1101 = vrot.lane.b32.xlu0 %v1079, 32
      %v1102 = vpop.permute.xlu0 %1101
      %v1110 = vsel %vm339, %v660, %v1090
      %v1111 = vsel %vm339, %v665, %v1092
      %v1112 = vsel %vm339, %v670, %v1094
      %v1113 = vsel %vm339, %v675, %v1096
      %v1114 = vsel %vm339, %v680, %v1098
      %v1115 = vsel %vm339, %v685, %v1100
      %v1116 = vsel %vm339, %v690, %v1102
      %v1117 = vld [vmem:[%s2] sm:$0xff]
      %v1118 = vld [vmem:[%s2 + $0x8] sm:$0xff]
      %v1119 = vld [vmem:[%s2 + $0x10] sm:$0xff]
      %v1120 = vld [vmem:[%s2 + $0x18] sm:$0xff]
      %v1121 = vld [vmem:[%s2 + $0x20] sm:$0xff]
      %v1122 = vld [vmem:[%s2 + $0x28] sm:$0xff]
      %v1123 = vld [vmem:[%s2 + $0x30] sm:$0xff]
      %v1124 = vld [vmem:[%s2 + $0x38] sm:$0xff]
      %v1126 = vsel %vm179, %v1110, 0
      %v1129 = vsel %vm179, %v1111, 0
      %v1132 = vsel %vm179, %v1112, 0
      %v1135 = vsel %vm179, %v1113, 0
      %v1138 = vsel %vm179, %v1114, 0
      %v1141 = vsel %vm179, %v1115, 0
      %v1144 = vsel %vm179, %v1116, 0
      %1146 = vmatprep.subr.mxu0 0.0
      %1147 = vmatpush1.msra.mxu0 0.0
      %1148 = vmatprep.subr.mxu0 0.0
      %1149 = vmatpush1.msra.mxu0 0.0
      %1150 = vmatprep.subr.mxu0 0.0
      %1151 = vmatpush1.msra.mxu0 0.0
      %1152 = vmatprep.subr.mxu0 0.0
      %1153 = vmatpush1.msra.mxu0 0.0
      %1154 = vmatprep.subr.mxu0 0.0
      %1155 = vmatpush1.msra.mxu0 0.0
      %1156 = vmatprep.subr.mxu0 0.0
      %1157 = vmatpush1.msra.mxu0 0.0
      %1158 = vmatprep.subr.mxu0 0.0
      %1159 = vmatpush1.msra.mxu0 0.0
      %1160 = vmatprep.subr.mxu0 0.0
      %1161 = vmatpush1.msra.mxu0 0.0
      %1162 = vmatprep.subr.mxu0 0.0
      %1163 = vmatpush1.msra.mxu0 %v1124
      %1164 = vmatprep.subr.mxu0 0.0
      %1165 = vmatpush1.msra.mxu0 %v1123
      %1166 = vmatprep.subr.mxu0 0.0
      %1167 = vmatpush1.msra.mxu0 %v1122
      %1168 = vmatprep.subr.mxu0 0.0
      %1169 = vmatpush1.msra.mxu0 %v1121
      %1170 = vmatprep.subr.mxu0 0.0
      %1171 = vmatpush1.msra.mxu0 %v1120
      %1172 = vmatprep.subr.mxu0 0.0
      %1173 = vmatpush1.msra.mxu0 %v1119
      %1174 = vmatprep.subr.mxu0 0.0
      %1175 = vmatpush1.msra.mxu0 %v1118
      %1176 = vmatprep.subr.mxu0 0.0
      %1177 = vmatpush1.msra.mxu0 %v1117
      %1178 = vmatprep.subr.mxu0 0.0
      %1179 = vmatpush2.msra.mxu0 0.0
      %1180 = vmatprep.subr.mxu0 0.0
      %1181 = vmatpush2.msra.mxu0 0.0
      %1182 = vmatprep.subr.mxu0 0.0
      %1183 = vmatpush2.msra.mxu0 0.0
      %1184 = vmatprep.subr.mxu0 0.0
      %1185 = vmatpush2.msra.mxu0 0.0
      %1186 = vmatprep.subr.mxu0 0.0
      %1187 = vmatpush2.msra.mxu0 0.0
      %1188 = vmatprep.subr.mxu0 0.0
      %1189 = vmatpush2.msra.mxu0 0.0
      %1190 = vmatprep.subr.mxu0 0.0
      %1191 = vmatpush2.msra.mxu0 0.0
      %1192 = vmatprep.subr.mxu0 0.0
      %1193 = vmatpush2.msra.mxu0 0.0
      %1194 = vmatprep.subr.mxu0 0.0
      %1195 = vmatpush2.msra.mxu0 0.0
      %1196 = vmatprep.subr.mxu0 0.0
      %1197 = vmatpush2.msra.mxu0 0.0
      %1198 = vmatprep.subr.mxu0 0.0
      %1199 = vmatpush2.msra.mxu0 0.0
      %1200 = vmatprep.subr.mxu0 0.0
      %1201 = vmatpush2.msra.mxu0 0.0
      %1202 = vmatprep.subr.mxu0 0.0
      %1203 = vmatpush2.msra.mxu0 0.0
      %1204 = vmatprep.subr.mxu0 0.0
      %1205 = vmatpush2.msra.mxu0 0.0
      %1206 = vmatprep.subr.mxu0 0.0
      %1207 = vmatpush2.msra.mxu0 0.0
      %1208 = vmatprep.subr.mxu0 0.0
      %1209 = vmatpush2.msra.mxu0 0.0
      %1210 = vmatprep.mubr.f32.mxu0 0.0
      %1211 = vmatmul.mubr.f32.gmra.mxu0 %v1126
      %v1212 = vpop.f32.mrf.mxu0
      %v1213 = vadd.f32 0.0, %v1212
      %v1214 = vpop.f32.mrf.mxu0
      %1215 = vmatprep.mubr.f32.mxu0 0.0
      %1216 = vmatmul.mubr.f32.gmra.mxu0 %v1129
      %v1217 = vpop.f32.mrf.mxu0
      %v1218 = vadd.f32 0.0, %v1217
      %v1219 = vpop.f32.mrf.mxu0
      %1220 = vmatprep.mubr.f32.mxu0 0.0
      %1221 = vmatmul.mubr.f32.gmra.mxu0 %v1132
      %v1222 = vpop.f32.mrf.mxu0
      %v1223 = vadd.f32 0.0, %v1222
      %v1224 = vpop.f32.mrf.mxu0
      %1225 = vmatprep.mubr.f32.mxu0 0.0
      %1226 = vmatmul.mubr.f32.gmra.mxu0 %v1135
      %v1227 = vpop.f32.mrf.mxu0
      %v1228 = vadd.f32 0.0, %v1227
      %v1229 = vpop.f32.mrf.mxu0
      %1230 = vmatprep.mubr.f32.mxu0 0.0
      %1231 = vmatmul.mubr.f32.gmra.mxu0 %v1138
      %v1232 = vpop.f32.mrf.mxu0
      %v1233 = vadd.f32 0.0, %v1232
      %v1234 = vpop.f32.mrf.mxu0
      %1235 = vmatprep.mubr.f32.mxu0 0.0
      %1236 = vmatmul.mubr.f32.gmra.mxu0 %v1141
      %v1237 = vpop.f32.mrf.mxu0
      %v1238 = vadd.f32 0.0, %v1237
      %v1239 = vpop.f32.mrf.mxu0
      %1240 = vmatprep.mubr.f32.mxu0 0.0
      %1241 = vmatmul.mubr.f32.gmra.mxu0 %v1144
      %v1242 = vpop.f32.mrf.mxu0
      %v1243 = vadd.f32 0.0, %v1242
      %v1244 = vpop.f32.mrf.mxu0
      %1245 = vdwg.mxu0
      %v1246 = vsel %vm179, %v1213, 0.0
      %1247 = vadd.xlane.f32.xlu0 %v1246
      %v1248 = vpop.xlane.xlu0 %1247
      %v1249 = vsel %vm179, %v1218, 0.0
      %1250 = vadd.xlane.f32.xlu0 %v1249
      %v1251 = vpop.xlane.xlu0 %1250
      %v1252 = vsel %vm179, %v1223, 0.0
      %1253 = vadd.xlane.f32.xlu0 %v1252
      %v1254 = vpop.xlane.xlu0 %1253
      %v1255 = vsel %vm179, %v1228, 0.0
      %1256 = vadd.xlane.f32.xlu0 %v1255
      %v1257 = vpop.xlane.xlu0 %1256
      %v1258 = vsel %vm179, %v1233, 0.0
      %1259 = vadd.xlane.f32.xlu0 %v1258
      %v1260 = vpop.xlane.xlu0 %1259
      %v1261 = vsel %vm179, %v1238, 0.0
      %1262 = vadd.xlane.f32.xlu0 %v1261
      %v1263 = vpop.xlane.xlu0 %1262
      %v1264 = vsel %vm198, %v1243, 0.0
      %1265 = vadd.xlane.f32.xlu0 %v1264
      %v1266 = vpop.xlane.xlu0 %1265
      %v1267 = vmul.f32 %v1248, %v202
      %v1268 = vmul.f32 %v1251, %v202
      %v1269 = vmul.f32 %v1254, %v202
      %v1270 = vmul.f32 %v1257, %v202
      %v1271 = vmul.f32 %v1260, %v202
      %v1272 = vmul.f32 %v1263, %v202
      %v1273 = vmul.f32 %v1266, %v202
      %v1274 = vsub.f32 %v1213, %v1267
      %v1275 = vsub.f32 %v1218, %v1268
      %v1276 = vsub.f32 %v1223, %v1269
      %v1277 = vsub.f32 %v1228, %v1270
      %v1278 = vsub.f32 %v1233, %v1271
      %v1279 = vsub.f32 %v1238, %v1272
      %v1280 = vsub.f32 %v1243, %v1273
      %v1281 = vmul.f32 %v1274, %v1274
      %v1282 = vmul.f32 %v1275, %v1275
      %v1283 = vmul.f32 %v1276, %v1276
      %v1284 = vmul.f32 %v1277, %v1277
      %v1285 = vmul.f32 %v1278, %v1278
      %v1286 = vmul.f32 %v1279, %v1279
      %v1287 = vmul.f32 %v1280, %v1280
      %v1288 = vsel %vm179, %v1281, 0.0
      %1289 = vadd.xlane.f32.xlu0 %v1288
      %v1290 = vpop.xlane.xlu0 %1289
      %v1291 = vsel %vm179, %v1282, 0.0
      %1292 = vadd.xlane.f32.xlu0 %v1291
      %v1293 = vpop.xlane.xlu0 %1292
      %v1294 = vsel %vm179, %v1283, 0.0
      %1295 = vadd.xlane.f32.xlu0 %v1294
      %v1296 = vpop.xlane.xlu0 %1295
      %v1297 = vsel %vm179, %v1284, 0.0
      %1298 = vadd.xlane.f32.xlu0 %v1297
      %v1299 = vpop.xlane.xlu0 %1298
      %v1300 = vsel %vm179, %v1285, 0.0
      %1301 = vadd.xlane.f32.xlu0 %v1300
      %v1302 = vpop.xlane.xlu0 %1301
      %v1303 = vsel %vm179, %v1286, 0.0
      %1304 = vadd.xlane.f32.xlu0 %v1303
      %v1305 = vpop.xlane.xlu0 %1304
      %v1306 = vsel %vm198, %v1287, 0.0
      %1307 = vadd.xlane.f32.xlu0 %v1306
      %v1308 = vpop.xlane.xlu0 %1307
      %v1309 = vmul.f32 %v1290, %v202
      %v1310 = vmul.f32 %v1293, %v202
      %v1311 = vmul.f32 %v1296, %v202
      %v1312 = vmul.f32 %v1299, %v202
      %v1313 = vmul.f32 %v1302, %v202
      %v1314 = vmul.f32 %v1305, %v202
      %v1315 = vmul.f32 %v1308, %v202
      %v1316 = vadd.f32 %v1309, 1e-06
      %v1317 = vadd.f32 %v1310, 1e-06
      %v1318 = vadd.f32 %v1311, 1e-06
      %v1319 = vadd.f32 %v1312, 1e-06
      %v1320 = vadd.f32 %v1313, 1e-06
      %v1321 = vadd.f32 %v1314, 1e-06
      %v1322 = vadd.f32 %v1315, 1e-06
      %v1323 = vrsqrt.pop %v1316
      %v1324 = vrsqrt.pop %v1317
      %v1325 = vrsqrt.pop %v1318
      %v1326 = vrsqrt.pop %v1319
      %v1327 = vrsqrt.pop %v1320
      %v1328 = vrsqrt.pop %v1321
      %v1329 = vrsqrt.pop %v1322
      %v1330 = vmul.f32 %v1274, %v1323
      %v1331 = vmul.f32 %v1275, %v1324
      %v1332 = vmul.f32 %v1276, %v1325
      %v1333 = vmul.f32 %v1277, %v1326
      %v1334 = vmul.f32 %v1278, %v1327
      %v1335 = vmul.f32 %v1279, %v1328
      %v1336 = vmul.f32 %v1280, %v1329
      %v1337 = vlaneseq
      %v1338 = vshrl.u32 %v1337, 7
      %v1339 = vsub.s32 6, %v1338
      %v1340 = vrot.slane %v178, %v1339
      %v1341 = vmul.f32 %v1330, %v1340
      %v1342 = vmul.f32 %v1331, %v1340
      %v1343 = vmul.f32 %v1332, %v1340
      %v1344 = vmul.f32 %v1333, %v1340
      %v1345 = vmul.f32 %v1334, %v1340
      %v1346 = vmul.f32 %v1335, %v1340
      %v1347 = vmul.f32 %v1336, %v1340
      %v1348 = vlaneseq
      %v1349 = vshrl.u32 %v1348, 7
      %v1350 = vsub.s32 7, %v1349
      %v1351 = vrot.slane %v178, %v1350
      %v1352 = vadd.f32 %v1341, %v1351
      %v1353 = vadd.f32 %v1342, %v1351
      %v1354 = vadd.f32 %v1343, %v1351
      %v1355 = vadd.f32 %v1344, %v1351
      %v1356 = vadd.f32 %v1345, %v1351
      %v1357 = vadd.f32 %v1346, %v1351
      %v1358 = vadd.f32 %v1347, %v1351
      %1359 = vst.msk [vmem:[%s170] sm:$0xff] %vm179, %v1352
      %1360 = vst.msk [vmem:[%s170 + $0x8] sm:$0xff] %vm179, %v1353
      %1361 = vst.msk [vmem:[%s170 + $0x10] sm:$0xff] %vm179, %v1354
      %1362 = vst.msk [vmem:[%s170 + $0x18] sm:$0xff] %vm179, %v1355
      %1363 = vst.msk [vmem:[%s170 + $0x20] sm:$0xff] %vm179, %v1356
      %1364 = vst.msk [vmem:[%s170 + $0x28] sm:$0xff] %vm179, %v1357
      %1365 = vst.msk [vmem:[%s170 + $0x30] sm:$0x1] %vm198, %v1358
      %p1366 = scmp.lt.s32.totalorder %s14, 1
      %s1367 = scalar_select %p1366, %s14, 1
      %s1368 = smul.addr %s1367, 7
      %s1369 = smul.addr %s1368, 8
      %s1370 = scalar_lea.vmem %s3, %s1369
      // Predicated region
      $region33: #{silutopsis_forward.2} parent=31 // pred_check
        %p1371 = pneg %p100
      $region34: #{silutopsis_forward.2} parent=31 // pred_check_branch
        %1373 = sbr.rel (%p1371) target = $region36
      $region35: #{silutopsis_forward.2} parent=31 // pred_region
        _
      $region36: #{silutopsis_forward.2} parent=31 // pred_fallthru
        _
    $region32: #{silutopsis_forward.2} parent=5 // pred_fallthru
      _
    %p1374 = scmp.le.s32.totalorder 2, %s9
    // Predicated region
    $region37: #{silutopsis_forward.2} parent=5 // pred_check
      %p1375 = pneg %p1374
    $region38: #{silutopsis_forward.2} parent=5 // pred_check_branch
      %1377 = sbr.rel (%p1375) target = $region40
    $region39: #{silutopsis_forward.2} parent=5 // pred_region
      %s1378 = ssub.s32 %s9, 2
      // Predicated region
      $region41: #{silutopsis_forward.2} parent=39 // pred_check
        %p1379 = pneg %p106
      $region42: #{silutopsis_forward.2} parent=39 // pred_check_branch
        %1381 = sbr.rel (%p1379) target = $region44
      $region43: #{silutopsis_forward.2} parent=39 // pred_region
        %p1382 = scmp.lt.s32.totalorder %s15, 1
        %s1383 = scalar_select %p1382, %s15, 1
        %s1384 = smul.addr %s1383, 7
        %s1385 = smul.addr %s1384, 8
        %s1386 = scalar_lea.vmem %s3, %s1385
      $region44: #{silutopsis_forward.2} parent=39 // pred_fallthru
        _
    $region40: #{silutopsis_forward.2} parent=5 // pred_fallthru
      _
  $region6: #{silutopsis_forward.2} parent=0 // loop_footer
    %s13 = sadd.s32 1, %s9
  $region7: #{silutopsis_forward.2} parent=0 // loop_footer_branch
    %8 = sbr.rel target = $region3
  $region8: #{silutopsis_forward.2} parent=0 // loop_exit
    _

</llo_original>
